<compile_context>
chip_gen: v7x
topology: tpu7x:2x2x1
jax: 0.10.0
libtpu: 0.0.40
codegen_flags: <defaults>
</compile_context>

<pallas_src>
import functools

import jax
import jax.numpy as jnp
import numpy as np
from jax.experimental import pallas as pl
from jax.experimental.pallas import tpu as pltpu


def _mha_fused_kernel(h_ref, wq_ref, wk_ref, wqt_ref, wkt_ref, adjT_ref, beta_ref,
                      final_ref, energy_ref, *, num_heads, out_dim, mxu_dtype):
    f32 = jnp.float32

    def mm(a, b):
        # standard last-dim x first-dim contraction on the MXU, f32 accumulation
        return jnp.dot(a.astype(mxu_dtype), b.astype(mxu_dtype),
                       preferred_element_type=f32)

    def mm_nt(a, b):
        # a @ b.T  (contract last dims of both) without an explicit transpose
        return jax.lax.dot_general(
            a.astype(mxu_dtype), b.astype(mxu_dtype),
            (((1,), (1,)), ((), ())), preferred_element_type=f32)

    x = h_ref[...]                       # [N, D_in]  f32
    AT = adjT_ref[...]                   # [N, N]     AT[v, u] = adj[u, v]  (dst-major mask)
    beta = beta_ref[0]                   # scalar (SMEM)
    inv_beta = 1.0 / beta                # one scalar reciprocal instead of N^2 divides

    # All-head projections as single lane-dense matmuls: [N, H*D_out]
    Qh_all = mm(x, wq_ref[...])
    Kh_all = mm(x, wk_ref[...])
    WqT_all = wqt_ref[...]               # [H*D_out, D_in], row h*D_out+z = Q[:, h, z]
    WkT_all = wkt_ref[...]               # [H*D_out, D_in], row h*D_out+z = K[:, h, z]

    N, D_in = final_ref.shape
    final_acc = jnp.zeros((N, D_in), f32)
    energy_acc = jnp.zeros((N, 1), f32)

    # Heads fused into one grid step; static (unrolled) loop over heads.
    for hd in range(num_heads):
        lo = hd * out_dim
        hi = lo + out_dim
        Qh = Qh_all[:, lo:hi]            # [N, D_out]
        Kh = Kh_all[:, lo:hi]            # [N, D_out]

        F1 = mm(Kh, WqT_all[lo:hi, :])   # [N, D_in]  F1[b,d] = sum_z Q[d,h,z] * K_h[b,z]
        F2 = mm(Qh, WkT_all[lo:hi, :])   # [N, D_in]  F2[b,d] = sum_z K[d,h,z] * Q_h[b,z]

        # R[v, u] = Q_h[v] . K_h[u]  ( == K_h[u] . Q_h[v] )  -> [dst, src]
        R = mm_nt(Qh, Kh)
        # Single exp over N^2; reused for both score directions (raw2 == raw1.T).
        E = jnp.exp(jnp.clip(R * inv_beta, -5.0, 5.0))

        # direction 1: score(u->v) = exp(clip(K_h[u].Q_h[v]/beta)), masked, dst-major
        S1 = E * AT                                          # [dst, src]
        z = jnp.sum(S1, axis=-1, keepdims=True)              # [N, 1]
        # NOTE: matches module semantics — isolated nodes (z == 0) yield inf/NaN.
        inv_z = pl.reciprocal(z)                             # exact; reused twice

        T1 = mm(S1, F1)                                      # [N, D_in]

        # direction 2: score2(u->v) = exp(clip(Q_h[u].K_h[v]/beta)) = E.T in dst-major
        S2 = E.T * AT                                        # one XLU transpose
        T2 = mm(S2, F2 * inv_z)                              # divide-by-z[src] folded in

        final_acc = final_acc + T1 * inv_z + T2
        energy_acc = energy_acc + beta * jnp.log(z)

    # Write-once outputs (no per-step read-modify-write).
    final_ref[...] = final_acc
    energy_ref[...] = energy_acc


def multi_head_attention_pallas(h, Q, K, beta, adj, *, use_bf16_mxu=False):
    """h: [N, D_in]; Q,K: [D_in, H, D_out]; beta: [1]; adj: [N, N] (adj[u,v]=1 iff u->v)."""
    N, D_in = h.shape
    _, H, D_out = Q.shape
    HD = H * D_out

    # Pre-flattened weights: one [D_in, H*D_out] slab for projections, and the per-head
    # transposed layout [H*D_out, D_in] for F1/F2 (no in-kernel weight transposes).
    Wq_flat = Q.reshape(D_in, HD)
    Wk_flat = K.reshape(D_in, HD)
    WqT_flat = jnp.transpose(Q, (1, 2, 0)).reshape(HD, D_in)
    WkT_flat = jnp.transpose(K, (1, 2, 0)).reshape(HD, D_in)
    adjT = adj.T                         # dst-major mask so aggregations are plain dots

    kernel = functools.partial(
        _mha_fused_kernel, num_heads=H, out_dim=D_out,
        mxu_dtype=jnp.bfloat16 if use_bf16_mxu else jnp.float32)

    grid_spec = pltpu.PrefetchScalarGridSpec(
        num_scalar_prefetch=0,
        grid=(1,),                       # heads fused: a single pipeline step
        in_specs=[
            pl.BlockSpec((N, D_in), lambda i: (0, 0)),    # h
            pl.BlockSpec((D_in, HD), lambda i: (0, 0)),   # Wq  [D_in, H*D_out]
            pl.BlockSpec((D_in, HD), lambda i: (0, 0)),   # Wk
            pl.BlockSpec((HD, D_in), lambda i: (0, 0)),   # Wq^T (per head)
            pl.BlockSpec((HD, D_in), lambda i: (0, 0)),   # Wk^T (per head)
            pl.BlockSpec((N, N), lambda i: (0, 0)),       # adj.T
            pl.BlockSpec(memory_space=pltpu.MemorySpace.SMEM),  # beta scalar
        ],
        out_specs=[
            pl.BlockSpec((N, D_in), lambda i: (0, 0)),    # final
            pl.BlockSpec((N, 1), lambda i: (0, 0)),       # energy
        ],
    )

    final, energy = pl.pallas_call(
        kernel,
        grid_spec=grid_spec,
        out_shape=(
            jax.ShapeDtypeStruct((N, D_in), jnp.float32),
            jax.ShapeDtypeStruct((N, 1), jnp.float32),
        ),
        compiler_params=pltpu.CompilerParams(
            dimension_semantics=("arbitrary",)),
    )(h, Wq_flat, Wk_flat, WqT_flat, WkT_flat, adjT, beta)

    return final, energy[:, 0]


def multi_head_attention_ref(h, Q, K, beta, adj):
    """Pure-JAX reference mirroring the PyTorch/DGL semantics (dense graph form)."""
    Qh = jnp.einsum('bd,dhz->bhz', h, Q)
    Kh = jnp.einsum('bd,dhz->bhz', h, K)
    F1 = jnp.einsum('dzh,bhz->bhd', jnp.transpose(Q, (0, 2, 1)), Kh)
    F2 = jnp.einsum('dzh,bhz->bhd', jnp.transpose(K, (0, 2, 1)), Qh)

    s1 = jnp.einsum('uhz,vhz->uvh', Kh, Qh)                 # K_h[src] . Q_h[dst]
    S1 = jnp.exp(jnp.clip(s1 / beta, -5.0, 5.0)) * adj[:, :, None]
    z = jnp.sum(S1, axis=0)                                 # [N, H]
    T1 = jnp.einsum('uvh,uhd->vhd', S1, F1)

    s2 = jnp.einsum('uhz,vhz->uvh', Qh, Kh)                 # Q_h[src] . K_h[dst]
    S2 = jnp.exp(jnp.clip(s2 / beta, -5.0, 5.0)) * adj[:, :, None]
    T2 = jnp.einsum('uvh,uhd->vhd', S2, F2 / z[:, :, None])

    head_out_1 = T1 / z[:, :, None]
    final = jnp.sum(head_out_1 + T2, axis=1)
    energy = (beta * jnp.log(z)).sum(axis=-1)
    return final, energy


if __name__ == "__main__":
    # small shapes consistent with the module
    N, in_dim, num_heads, out_dim = 16, 32, 4, 16

    key = jax.random.PRNGKey(0)
    k_h, k_q, k_k, k_a = jax.random.split(key, 4)

    # deterministic parameter init (matches nn.init.normal_(std=0.01), beta=sqrt(out_dim))
    h_feat = jax.random.normal(k_h, (N, in_dim), dtype=jnp.float32)
    Q = 0.01 * jax.random.normal(k_q, (in_dim, num_heads, out_dim), dtype=jnp.float32)
    K = 0.01 * jax.random.normal(k_k, (in_dim, num_heads, out_dim), dtype=jnp.float32)
    beta = jnp.array([np.sqrt(out_dim)], dtype=jnp.float32)

    # deterministic directed graph: random edges + self-loops (every node has an in-edge)
    adj = (jax.random.uniform(k_a, (N, N)) < 0.5).astype(jnp.float32)
    adj = jnp.clip(adj + jnp.eye(N, dtype=jnp.float32), 0.0, 1.0)

    final, energy = multi_head_attention_pallas(h_feat, Q, K, beta, adj)
    jax.block_until_ready((final, energy))

    final_ref, energy_ref = multi_head_attention_ref(h_feat, Q, K, beta, adj)
    np.testing.assert_allclose(np.asarray(final), np.asarray(final_ref),
                               rtol=1e-4, atol=1e-4)
    np.testing.assert_allclose(np.asarray(energy), np.asarray(energy_ref),
                               rtol=1e-4, atol=1e-4)

    print("KERNEL_OK")
</pallas_src>

<mosaic_0001>
module attributes {stable_mosaic.version = 11 : i64} {
  func.func @_mha_fused_kernel(%arg0: i32, %arg1: memref<16x32xf32, #tpu.memory_space<vmem>>, %arg2: memref<32x64xf32, #tpu.memory_space<vmem>>, %arg3: memref<32x64xf32, #tpu.memory_space<vmem>>, %arg4: memref<64x32xf32, #tpu.memory_space<vmem>>, %arg5: memref<64x32xf32, #tpu.memory_space<vmem>>, %arg6: memref<16x16xf32, #tpu.memory_space<vmem>>, %arg7: memref<1xf32, #tpu.memory_space<smem>>, %arg8: memref<16x32xf32, #tpu.memory_space<vmem>>, %arg9: memref<16x1xf32, #tpu.memory_space<vmem>>) attributes {dimension_semantics = [#tpu.dimension_semantics<arbitrary>], iteration_bounds = array<i64: 1>, scalar_prefetch = 0 : i64, scratch_operands = 0 : i64, tpu.core_type = #tpu.core_type<tc>, window_params = [{pipeline_mode = #tpu.pipeline_mode<synchronous>, transform_indices = @transform_0, window_bounds = array<i64: 16, 32>}, {pipeline_mode = #tpu.pipeline_mode<synchronous>, transform_indices = @transform_1, window_bounds = array<i64: 32, 64>}, {pipeline_mode = #tpu.pipeline_mode<synchronous>, transform_indices = @transform_2, window_bounds = array<i64: 32, 64>}, {pipeline_mode = #tpu.pipeline_mode<synchronous>, transform_indices = @transform_3, window_bounds = array<i64: 64, 32>}, {pipeline_mode = #tpu.pipeline_mode<synchronous>, transform_indices = @transform_4, window_bounds = array<i64: 64, 32>}, {pipeline_mode = #tpu.pipeline_mode<synchronous>, transform_indices = @transform_5, window_bounds = array<i64: 16, 16>}, {transform_indices = @transform_6, window_bounds = array<i64: 1>}, {pipeline_mode = #tpu.pipeline_mode<synchronous>, transform_indices = @transform_7, window_bounds = array<i64: 16, 32>}, {pipeline_mode = #tpu.pipeline_mode<synchronous>, transform_indices = @transform_8, window_bounds = array<i64: 16, 1>}]} {
    %c0 = arith.constant 0 : index
    %c0_0 = arith.constant 0 : index
    %0 = vector.load %arg1[%c0, %c0_0] : memref<16x32xf32, #tpu.memory_space<vmem>>, vector<16x32xf32>
    %c0_1 = arith.constant 0 : index
    %c0_2 = arith.constant 0 : index
    %1 = vector.load %arg6[%c0_1, %c0_2] : memref<16x16xf32, #tpu.memory_space<vmem>>, vector<16x16xf32>
    %c0_3 = arith.constant 0 : index
    %2 = memref.load %arg7[%c0_3] : memref<1xf32, #tpu.memory_space<smem>>
    %cst = arith.constant 1.000000e+00 : f32
    %3 = arith.divf %cst, %2 : f32
    %c0_4 = arith.constant 0 : index
    %c0_5 = arith.constant 0 : index
    %4 = vector.load %arg2[%c0_4, %c0_5] : memref<32x64xf32, #tpu.memory_space<vmem>>, vector<32x64xf32>
    %cst_6 = arith.constant dense<0.000000e+00> : vector<16x64xf32>
    %5 = tpu.matmul %0, %4, %cst_6 {dimension_numbers = #tpu.dot_dimension_numbers<[1], [0], [0], [1], [0, 0, 1, 1], [], []>} : vector<16x32xf32>, vector<32x64xf32>, vector<16x64xf32> -> vector<16x64xf32>
    %c0_7 = arith.constant 0 : index
    %c0_8 = arith.constant 0 : index
    %6 = vector.load %arg3[%c0_7, %c0_8] : memref<32x64xf32, #tpu.memory_space<vmem>>, vector<32x64xf32>
    %cst_9 = arith.constant dense<0.000000e+00> : vector<16x64xf32>
    %7 = tpu.matmul %0, %6, %cst_9 {dimension_numbers = #tpu.dot_dimension_numbers<[1], [0], [0], [1], [0, 0, 1, 1], [], []>} : vector<16x32xf32>, vector<32x64xf32>, vector<16x64xf32> -> vector<16x64xf32>
    %c0_10 = arith.constant 0 : index
    %c0_11 = arith.constant 0 : index
    %8 = vector.load %arg4[%c0_10, %c0_11] : memref<64x32xf32, #tpu.memory_space<vmem>>, vector<64x32xf32>
    %c0_12 = arith.constant 0 : index
    %c0_13 = arith.constant 0 : index
    %9 = vector.load %arg5[%c0_12, %c0_13] : memref<64x32xf32, #tpu.memory_space<vmem>>, vector<64x32xf32>
    %cst_14 = arith.constant 0.000000e+00 : f32
    %10 = vector.broadcast %cst_14 : f32 to vector<16x32xf32>
    %cst_15 = arith.constant 0.000000e+00 : f32
    %11 = vector.broadcast %cst_15 : f32 to vector<16x1xf32>
    %12 = vector.extract_strided_slice %5 {offsets = [0, 0], sizes = [16, 16], strides = [1, 1]} : vector<16x64xf32> to vector<16x16xf32>
    %13 = vector.extract_strided_slice %7 {offsets = [0, 0], sizes = [16, 16], strides = [1, 1]} : vector<16x64xf32> to vector<16x16xf32>
    %14 = vector.extract_strided_slice %8 {offsets = [0, 0], sizes = [16, 32], strides = [1, 1]} : vector<64x32xf32> to vector<16x32xf32>
    %cst_16 = arith.constant dense<0.000000e+00> : vector<16x32xf32>
    %15 = tpu.matmul %13, %14, %cst_16 {dimension_numbers = #tpu.dot_dimension_numbers<[1], [0], [0], [1], [0, 0, 1, 1], [], []>} : vector<16x16xf32>, vector<16x32xf32>, vector<16x32xf32> -> vector<16x32xf32>
    %16 = vector.extract_strided_slice %9 {offsets = [0, 0], sizes = [16, 32], strides = [1, 1]} : vector<64x32xf32> to vector<16x32xf32>
    %cst_17 = arith.constant dense<0.000000e+00> : vector<16x32xf32>
    %17 = tpu.matmul %12, %16, %cst_17 {dimension_numbers = #tpu.dot_dimension_numbers<[1], [0], [0], [1], [0, 0, 1, 1], [], []>} : vector<16x16xf32>, vector<16x32xf32>, vector<16x32xf32> -> vector<16x32xf32>
    %cst_18 = arith.constant dense<0.000000e+00> : vector<16x16xf32>
    %18 = tpu.matmul %12, %13, %cst_18 {dimension_numbers = #tpu.dot_dimension_numbers<[1], [1], [0], [0], [0, 0, 1, 0], [], []>} : vector<16x16xf32>, vector<16x16xf32>, vector<16x16xf32> -> vector<16x16xf32>
    %19 = vector.broadcast %3 : f32 to vector<16x16xf32>
    %20 = arith.mulf %18, %19 : vector<16x16xf32>
    %cst_19 = arith.constant -5.000000e+00 : f32
    %cst_20 = arith.constant 5.000000e+00 : f32
    %21 = vector.broadcast %cst_19 : f32 to vector<16x16xf32>
    %22 = arith.maximumf %21, %20 : vector<16x16xf32>
    %23 = vector.broadcast %cst_20 : f32 to vector<16x16xf32>
    %24 = arith.minimumf %23, %22 : vector<16x16xf32>
    %25 = math.exp %24 : vector<16x16xf32>
    %26 = arith.mulf %25, %1 : vector<16x16xf32>
    %cst_21 = arith.constant dense<0.000000e+00> : vector<16xf32>
    %27 = vector.multi_reduction <add>, %26, %cst_21 [1] : vector<16x16xf32> to vector<16xf32>
    %28 = vector.shape_cast %27 : vector<16xf32> to vector<16x1xf32>
    %29 = tpu.reciprocal %28 : vector<16x1xf32> -> vector<16x1xf32>
    %cst_22 = arith.constant dense<0.000000e+00> : vector<16x32xf32>
    %30 = tpu.matmul %26, %15, %cst_22 {dimension_numbers = #tpu.dot_dimension_numbers<[1], [0], [0], [1], [0, 0, 1, 1], [], []>} : vector<16x16xf32>, vector<16x32xf32>, vector<16x32xf32> -> vector<16x32xf32>
    %31 = tpu.transpose %25, [1, 0] : vector<16x16xf32> -> vector<16x16xf32>
    %32 = arith.mulf %31, %1 : vector<16x16xf32>
    %33 = vector.broadcast %29 : vector<16x1xf32> to vector<16x32xf32>
    %34 = arith.mulf %17, %33 : vector<16x32xf32>
    %cst_23 = arith.constant dense<0.000000e+00> : vector<16x32xf32>
    %35 = tpu.matmul %32, %34, %cst_23 {dimension_numbers = #tpu.dot_dimension_numbers<[1], [0], [0], [1], [0, 0, 1, 1], [], []>} : vector<16x16xf32>, vector<16x32xf32>, vector<16x32xf32> -> vector<16x32xf32>
    %36 = vector.broadcast %29 : vector<16x1xf32> to vector<16x32xf32>
    %37 = arith.mulf %30, %36 : vector<16x32xf32>
    %38 = arith.addf %10, %37 : vector<16x32xf32>
    %39 = arith.addf %38, %35 : vector<16x32xf32>
    %40 = math.log %28 : vector<16x1xf32>
    %41 = vector.broadcast %2 : f32 to vector<16x1xf32>
    %42 = arith.mulf %41, %40 : vector<16x1xf32>
    %43 = arith.addf %11, %42 : vector<16x1xf32>
    %44 = vector.extract_strided_slice %5 {offsets = [0, 16], sizes = [16, 16], strides = [1, 1]} : vector<16x64xf32> to vector<16x16xf32>
    %45 = vector.extract_strided_slice %7 {offsets = [0, 16], sizes = [16, 16], strides = [1, 1]} : vector<16x64xf32> to vector<16x16xf32>
    %46 = vector.extract_strided_slice %8 {offsets = [16, 0], sizes = [16, 32], strides = [1, 1]} : vector<64x32xf32> to vector<16x32xf32>
    %cst_24 = arith.constant dense<0.000000e+00> : vector<16x32xf32>
    %47 = tpu.matmul %45, %46, %cst_24 {dimension_numbers = #tpu.dot_dimension_numbers<[1], [0], [0], [1], [0, 0, 1, 1], [], []>} : vector<16x16xf32>, vector<16x32xf32>, vector<16x32xf32> -> vector<16x32xf32>
    %48 = vector.extract_strided_slice %9 {offsets = [16, 0], sizes = [16, 32], strides = [1, 1]} : vector<64x32xf32> to vector<16x32xf32>
    %cst_25 = arith.constant dense<0.000000e+00> : vector<16x32xf32>
    %49 = tpu.matmul %44, %48, %cst_25 {dimension_numbers = #tpu.dot_dimension_numbers<[1], [0], [0], [1], [0, 0, 1, 1], [], []>} : vector<16x16xf32>, vector<16x32xf32>, vector<16x32xf32> -> vector<16x32xf32>
    %cst_26 = arith.constant dense<0.000000e+00> : vector<16x16xf32>
    %50 = tpu.matmul %44, %45, %cst_26 {dimension_numbers = #tpu.dot_dimension_numbers<[1], [1], [0], [0], [0, 0, 1, 0], [], []>} : vector<16x16xf32>, vector<16x16xf32>, vector<16x16xf32> -> vector<16x16xf32>
    %51 = vector.broadcast %3 : f32 to vector<16x16xf32>
    %52 = arith.mulf %50, %51 : vector<16x16xf32>
    %cst_27 = arith.constant -5.000000e+00 : f32
    %cst_28 = arith.constant 5.000000e+00 : f32
    %53 = vector.broadcast %cst_27 : f32 to vector<16x16xf32>
    %54 = arith.maximumf %53, %52 : vector<16x16xf32>
    %55 = vector.broadcast %cst_28 : f32 to vector<16x16xf32>
    %56 = arith.minimumf %55, %54 : vector<16x16xf32>
    %57 = math.exp %56 : vector<16x16xf32>
    %58 = arith.mulf %57, %1 : vector<16x16xf32>
    %cst_29 = arith.constant dense<0.000000e+00> : vector<16xf32>
    %59 = vector.multi_reduction <add>, %58, %cst_29 [1] : vector<16x16xf32> to vector<16xf32>
    %60 = vector.shape_cast %59 : vector<16xf32> to vector<16x1xf32>
    %61 = tpu.reciprocal %60 : vector<16x1xf32> -> vector<16x1xf32>
    %cst_30 = arith.constant dense<0.000000e+00> : vector<16x32xf32>
    %62 = tpu.matmul %58, %47, %cst_30 {dimension_numbers = #tpu.dot_dimension_numbers<[1], [0], [0], [1], [0, 0, 1, 1], [], []>} : vector<16x16xf32>, vector<16x32xf32>, vector<16x32xf32> -> vector<16x32xf32>
    %63 = tpu.transpose %57, [1, 0] : vector<16x16xf32> -> vector<16x16xf32>
    %64 = arith.mulf %63, %1 : vector<16x16xf32>
    %65 = vector.broadcast %61 : vector<16x1xf32> to vector<16x32xf32>
    %66 = arith.mulf %49, %65 : vector<16x32xf32>
    %cst_31 = arith.constant dense<0.000000e+00> : vector<16x32xf32>
    %67 = tpu.matmul %64, %66, %cst_31 {dimension_numbers = #tpu.dot_dimension_numbers<[1], [0], [0], [1], [0, 0, 1, 1], [], []>} : vector<16x16xf32>, vector<16x32xf32>, vector<16x32xf32> -> vector<16x32xf32>
    %68 = vector.broadcast %61 : vector<16x1xf32> to vector<16x32xf32>
    %69 = arith.mulf %62, %68 : vector<16x32xf32>
    %70 = arith.addf %39, %69 : vector<16x32xf32>
    %71 = arith.addf %70, %67 : vector<16x32xf32>
    %72 = math.log %60 : vector<16x1xf32>
    %73 = vector.broadcast %2 : f32 to vector<16x1xf32>
    %74 = arith.mulf %73, %72 : vector<16x1xf32>
    %75 = arith.addf %43, %74 : vector<16x1xf32>
    %76 = vector.extract_strided_slice %5 {offsets = [0, 32], sizes = [16, 16], strides = [1, 1]} : vector<16x64xf32> to vector<16x16xf32>
    %77 = vector.extract_strided_slice %7 {offsets = [0, 32], sizes = [16, 16], strides = [1, 1]} : vector<16x64xf32> to vector<16x16xf32>
    %78 = vector.extract_strided_slice %8 {offsets = [32, 0], sizes = [16, 32], strides = [1, 1]} : vector<64x32xf32> to vector<16x32xf32>
    %cst_32 = arith.constant dense<0.000000e+00> : vector<16x32xf32>
    %79 = tpu.matmul %77, %78, %cst_32 {dimension_numbers = #tpu.dot_dimension_numbers<[1], [0], [0], [1], [0, 0, 1, 1], [], []>} : vector<16x16xf32>, vector<16x32xf32>, vector<16x32xf32> -> vector<16x32xf32>
    %80 = vector.extract_strided_slice %9 {offsets = [32, 0], sizes = [16, 32], strides = [1, 1]} : vector<64x32xf32> to vector<16x32xf32>
    %cst_33 = arith.constant dense<0.000000e+00> : vector<16x32xf32>
    %81 = tpu.matmul %76, %80, %cst_33 {dimension_numbers = #tpu.dot_dimension_numbers<[1], [0], [0], [1], [0, 0, 1, 1], [], []>} : vector<16x16xf32>, vector<16x32xf32>, vector<16x32xf32> -> vector<16x32xf32>
    %cst_34 = arith.constant dense<0.000000e+00> : vector<16x16xf32>
    %82 = tpu.matmul %76, %77, %cst_34 {dimension_numbers = #tpu.dot_dimension_numbers<[1], [1], [0], [0], [0, 0, 1, 0], [], []>} : vector<16x16xf32>, vector<16x16xf32>, vector<16x16xf32> -> vector<16x16xf32>
    %83 = vector.broadcast %3 : f32 to vector<16x16xf32>
    %84 = arith.mulf %82, %83 : vector<16x16xf32>
    %cst_35 = arith.constant -5.000000e+00 : f32
    %cst_36 = arith.constant 5.000000e+00 : f32
    %85 = vector.broadcast %cst_35 : f32 to vector<16x16xf32>
    %86 = arith.maximumf %85, %84 : vector<16x16xf32>
    %87 = vector.broadcast %cst_36 : f32 to vector<16x16xf32>
    %88 = arith.minimumf %87, %86 : vector<16x16xf32>
    %89 = math.exp %88 : vector<16x16xf32>
    %90 = arith.mulf %89, %1 : vector<16x16xf32>
    %cst_37 = arith.constant dense<0.000000e+00> : vector<16xf32>
    %91 = vector.multi_reduction <add>, %90, %cst_37 [1] : vector<16x16xf32> to vector<16xf32>
    %92 = vector.shape_cast %91 : vector<16xf32> to vector<16x1xf32>
    %93 = tpu.reciprocal %92 : vector<16x1xf32> -> vector<16x1xf32>
    %cst_38 = arith.constant dense<0.000000e+00> : vector<16x32xf32>
    %94 = tpu.matmul %90, %79, %cst_38 {dimension_numbers = #tpu.dot_dimension_numbers<[1], [0], [0], [1], [0, 0, 1, 1], [], []>} : vector<16x16xf32>, vector<16x32xf32>, vector<16x32xf32> -> vector<16x32xf32>
    %95 = tpu.transpose %89, [1, 0] : vector<16x16xf32> -> vector<16x16xf32>
    %96 = arith.mulf %95, %1 : vector<16x16xf32>
    %97 = vector.broadcast %93 : vector<16x1xf32> to vector<16x32xf32>
    %98 = arith.mulf %81, %97 : vector<16x32xf32>
    %cst_39 = arith.constant dense<0.000000e+00> : vector<16x32xf32>
    %99 = tpu.matmul %96, %98, %cst_39 {dimension_numbers = #tpu.dot_dimension_numbers<[1], [0], [0], [1], [0, 0, 1, 1], [], []>} : vector<16x16xf32>, vector<16x32xf32>, vector<16x32xf32> -> vector<16x32xf32>
    %100 = vector.broadcast %93 : vector<16x1xf32> to vector<16x32xf32>
    %101 = arith.mulf %94, %100 : vector<16x32xf32>
    %102 = arith.addf %71, %101 : vector<16x32xf32>
    %103 = arith.addf %102, %99 : vector<16x32xf32>
    %104 = math.log %92 : vector<16x1xf32>
    %105 = vector.broadcast %2 : f32 to vector<16x1xf32>
    %106 = arith.mulf %105, %104 : vector<16x1xf32>
    %107 = arith.addf %75, %106 : vector<16x1xf32>
    %108 = vector.extract_strided_slice %5 {offsets = [0, 48], sizes = [16, 16], strides = [1, 1]} : vector<16x64xf32> to vector<16x16xf32>
    %109 = vector.extract_strided_slice %7 {offsets = [0, 48], sizes = [16, 16], strides = [1, 1]} : vector<16x64xf32> to vector<16x16xf32>
    %110 = vector.extract_strided_slice %8 {offsets = [48, 0], sizes = [16, 32], strides = [1, 1]} : vector<64x32xf32> to vector<16x32xf32>
    %cst_40 = arith.constant dense<0.000000e+00> : vector<16x32xf32>
    %111 = tpu.matmul %109, %110, %cst_40 {dimension_numbers = #tpu.dot_dimension_numbers<[1], [0], [0], [1], [0, 0, 1, 1], [], []>} : vector<16x16xf32>, vector<16x32xf32>, vector<16x32xf32> -> vector<16x32xf32>
    %112 = vector.extract_strided_slice %9 {offsets = [48, 0], sizes = [16, 32], strides = [1, 1]} : vector<64x32xf32> to vector<16x32xf32>
    %cst_41 = arith.constant dense<0.000000e+00> : vector<16x32xf32>
    %113 = tpu.matmul %108, %112, %cst_41 {dimension_numbers = #tpu.dot_dimension_numbers<[1], [0], [0], [1], [0, 0, 1, 1], [], []>} : vector<16x16xf32>, vector<16x32xf32>, vector<16x32xf32> -> vector<16x32xf32>
    %cst_42 = arith.constant dense<0.000000e+00> : vector<16x16xf32>
    %114 = tpu.matmul %108, %109, %cst_42 {dimension_numbers = #tpu.dot_dimension_numbers<[1], [1], [0], [0], [0, 0, 1, 0], [], []>} : vector<16x16xf32>, vector<16x16xf32>, vector<16x16xf32> -> vector<16x16xf32>
    %115 = vector.broadcast %3 : f32 to vector<16x16xf32>
    %116 = arith.mulf %114, %115 : vector<16x16xf32>
    %cst_43 = arith.constant -5.000000e+00 : f32
    %cst_44 = arith.constant 5.000000e+00 : f32
    %117 = vector.broadcast %cst_43 : f32 to vector<16x16xf32>
    %118 = arith.maximumf %117, %116 : vector<16x16xf32>
    %119 = vector.broadcast %cst_44 : f32 to vector<16x16xf32>
    %120 = arith.minimumf %119, %118 : vector<16x16xf32>
    %121 = math.exp %120 : vector<16x16xf32>
    %122 = arith.mulf %121, %1 : vector<16x16xf32>
    %cst_45 = arith.constant dense<0.000000e+00> : vector<16xf32>
    %123 = vector.multi_reduction <add>, %122, %cst_45 [1] : vector<16x16xf32> to vector<16xf32>
    %124 = vector.shape_cast %123 : vector<16xf32> to vector<16x1xf32>
    %125 = tpu.reciprocal %124 : vector<16x1xf32> -> vector<16x1xf32>
    %cst_46 = arith.constant dense<0.000000e+00> : vector<16x32xf32>
    %126 = tpu.matmul %122, %111, %cst_46 {dimension_numbers = #tpu.dot_dimension_numbers<[1], [0], [0], [1], [0, 0, 1, 1], [], []>} : vector<16x16xf32>, vector<16x32xf32>, vector<16x32xf32> -> vector<16x32xf32>
    %127 = tpu.transpose %121, [1, 0] : vector<16x16xf32> -> vector<16x16xf32>
    %128 = arith.mulf %127, %1 : vector<16x16xf32>
    %129 = vector.broadcast %125 : vector<16x1xf32> to vector<16x32xf32>
    %130 = arith.mulf %113, %129 : vector<16x32xf32>
    %cst_47 = arith.constant dense<0.000000e+00> : vector<16x32xf32>
    %131 = tpu.matmul %128, %130, %cst_47 {dimension_numbers = #tpu.dot_dimension_numbers<[1], [0], [0], [1], [0, 0, 1, 1], [], []>} : vector<16x16xf32>, vector<16x32xf32>, vector<16x32xf32> -> vector<16x32xf32>
    %132 = vector.broadcast %125 : vector<16x1xf32> to vector<16x32xf32>
    %133 = arith.mulf %126, %132 : vector<16x32xf32>
    %134 = arith.addf %103, %133 : vector<16x32xf32>
    %135 = arith.addf %134, %131 : vector<16x32xf32>
    %136 = math.log %124 : vector<16x1xf32>
    %137 = vector.broadcast %2 : f32 to vector<16x1xf32>
    %138 = arith.mulf %137, %136 : vector<16x1xf32>
    %139 = arith.addf %107, %138 : vector<16x1xf32>
    %c0_48 = arith.constant 0 : index
    %c0_49 = arith.constant 0 : index
    %140 = vector.load %arg8[%c0_48, %c0_49] : memref<16x32xf32, #tpu.memory_space<vmem>>, vector<16x32xf32>
    tpu.vector_store %arg8[%c0_48, %c0_49], %135 {strides = array<i32>} : memref<16x32xf32, #tpu.memory_space<vmem>>, vector<16x32xf32>,
    %c0_50 = arith.constant 0 : index
    %c0_51 = arith.constant 0 : index
    %141 = vector.load %arg9[%c0_50, %c0_51] : memref<16x1xf32, #tpu.memory_space<vmem>>, vector<16x1xf32>
    tpu.vector_store %arg9[%c0_50, %c0_51], %139 {strides = array<i32>} : memref<16x1xf32, #tpu.memory_space<vmem>>, vector<16x1xf32>,
    return
  }
  func.func @transform_0(%arg0: i32) -> (i32, i32) {
    %c0_i32 = arith.constant 0 : i32
    %c0_i32_0 = arith.constant 0 : i32
    %c0_i32_1 = arith.constant 0 : i32
    return %c0_i32, %c0_i32_0 : i32, i32
  }
  func.func @transform_1(%arg0: i32) -> (i32, i32) {
    %c0_i32 = arith.constant 0 : i32
    %c0_i32_0 = arith.constant 0 : i32
    %c0_i32_1 = arith.constant 0 : i32
    return %c0_i32, %c0_i32_0 : i32, i32
  }
  func.func @transform_2(%arg0: i32) -> (i32, i32) {
    %c0_i32 = arith.constant 0 : i32
    %c0_i32_0 = arith.constant 0 : i32
    %c0_i32_1 = arith.constant 0 : i32
    return %c0_i32, %c0_i32_0 : i32, i32
  }
  func.func @transform_3(%arg0: i32) -> (i32, i32) {
    %c0_i32 = arith.constant 0 : i32
    %c0_i32_0 = arith.constant 0 : i32
    %c0_i32_1 = arith.constant 0 : i32
    return %c0_i32, %c0_i32_0 : i32, i32
  }
  func.func @transform_4(%arg0: i32) -> (i32, i32) {
    %c0_i32 = arith.constant 0 : i32
    %c0_i32_0 = arith.constant 0 : i32
    %c0_i32_1 = arith.constant 0 : i32
    return %c0_i32, %c0_i32_0 : i32, i32
  }
  func.func @transform_5(%arg0: i32) -> (i32, i32) {
    %c0_i32 = arith.constant 0 : i32
    %c0_i32_0 = arith.constant 0 : i32
    %c0_i32_1 = arith.constant 0 : i32
    return %c0_i32, %c0_i32_0 : i32, i32
  }
  func.func @transform_6(%arg0: i32) -> i32 {
    %c0_i32 = arith.constant 0 : i32
    %c0_i32_0 = arith.constant 0 : i32
    return %c0_i32 : i32
  }
  func.func @transform_7(%arg0: i32) -> (i32, i32) {
    %c0_i32 = arith.constant 0 : i32
    %c0_i32_0 = arith.constant 0 : i32
    %c0_i32_1 = arith.constant 0 : i32
    return %c0_i32, %c0_i32_0 : i32, i32
  }
  func.func @transform_8(%arg0: i32) -> (i32, i32) {
    %c0_i32 = arith.constant 0 : i32
    %c0_i32_0 = arith.constant 0 : i32
    %c0_i32_1 = arith.constant 0 : i32
    return %c0_i32, %c0_i32_0 : i32, i32
  }
}

</mosaic_0001>

<llo_original>
// kernel: tpu_custom_call.1
$region0: #{tpu_custom_call.1}
  #allocation0 [shape = 'u32[]', space=smem, size = 0x4, offset = 0x4, fixed_abs, tag = 'smem constant byte address 0x4 - core index']
  #allocation1 [shape = 'u32[144,128]{1,0:T(1,128)}', space=vmem, size = 0x12000, scoped, tag = 'internal scratch']
  #allocation2 [shape = 'f32[1]{0:T(128)S(6)}', space=smem, size = 0x200, scoped, tag = 'scoped memory for tpu_custom_call.1']
  %s0 = inlined_call_operand.vmem [shape: f32[16,32], index: 0, kind: input, shape index: {}]
  %s1 = inlined_call_operand.vmem [shape: f32[32,64], index: 1, kind: input, shape index: {}]
  %s2 = inlined_call_operand.vmem [shape: f32[32,64], index: 2, kind: input, shape index: {}]
  %s3 = inlined_call_operand.vmem [shape: f32[64,32], index: 3, kind: input, shape index: {}]
  %s4 = inlined_call_operand.vmem [shape: f32[64,32], index: 4, kind: input, shape index: {}]
  %s5 = inlined_call_operand.vmem [shape: f32[16,16], index: 5, kind: input, shape index: {}]
  %s6 = inlined_call_operand.<no memory space> [shape: f32[1], index: 6, kind: input, shape index: {}]
  %s7 = inlined_call_operand.hbm [shape: f32[16,32], index: 7, kind: output, shape index: {0}]
  %s8 = inlined_call_operand.vmem [shape: f32[16,1], index: 8, kind: output, shape index: {1}]
  %9 = xla_tuple %s7, %s8
  %s10 = sld [smem:[#allocation0]]
  $region46: #{tpu_custom_call.1} parent=0
    _
  %s12 = ssub.s32 1, %s10
  %s13 = scalar_select 0, %s12, %s10
  %14 = sst [smem:[#allocation2]] %s6
  $region1: #{tpu_custom_call.1} parent=0
    #allocation3 [shape = 'u8[8192]{0}', space=vmem, size = 0x2000, scoped, tag = 'output window, operand 0, single buffered']
    #allocation4 [shape = 's32[1]{0}', space=sflag, size = 0x4, scoped, tag = 'scoped memory for tpu_custom_call.1']
    %15 = vsyncpa [#allocation4], 0
    // Predicated region
    $region2: #{tpu_custom_call.1} parent=1 // pred_check
      _
    $region3: #{tpu_custom_call.1} parent=1 // pred_check_branch
      %17 = sbr.rel (0) target = $region5
    $region4: #{tpu_custom_call.1} parent=1 // pred_region
      _
    $region5: #{tpu_custom_call.1} parent=1 // pred_fallthru
      _
    // Predicated region
    $region6: #{tpu_custom_call.1} parent=1 // pred_check
      _
    $region7: #{tpu_custom_call.1} parent=1 // pred_check_branch
      %19 = sbr.rel (0) target = $region9
    $region8: #{tpu_custom_call.1} parent=1 // pred_region
      _
    $region9: #{tpu_custom_call.1} parent=1 // pred_fallthru
      _
    // Predicated region
    $region10: #{tpu_custom_call.1} parent=1 // pred_check
      _
    $region11: #{tpu_custom_call.1} parent=1 // pred_check_branch
      %21 = sbr.rel (0) target = $region13
    $region12: #{tpu_custom_call.1} parent=1 // pred_region
      _
    $region13: #{tpu_custom_call.1} parent=1 // pred_fallthru
      _
    // Predicated region
    $region14: #{tpu_custom_call.1} parent=1 // pred_check
      _
    $region15: #{tpu_custom_call.1} parent=1 // pred_check_branch
      %23 = sbr.rel (0) target = $region17
    $region16: #{tpu_custom_call.1} parent=1 // pred_region
      _
    $region17: #{tpu_custom_call.1} parent=1 // pred_fallthru
      _
    // Predicated region
    $region18: #{tpu_custom_call.1} parent=1 // pred_check
      _
    $region19: #{tpu_custom_call.1} parent=1 // pred_check_branch
      %25 = sbr.rel (0) target = $region21
    $region20: #{tpu_custom_call.1} parent=1 // pred_region
      _
    $region21: #{tpu_custom_call.1} parent=1 // pred_fallthru
      _
    // Predicated region
    $region22: #{tpu_custom_call.1} parent=1 // pred_check
      _
    $region23: #{tpu_custom_call.1} parent=1 // pred_check_branch
      %27 = sbr.rel (0) target = $region25
    $region24: #{tpu_custom_call.1} parent=1 // pred_region
      _
    $region25: #{tpu_custom_call.1} parent=1 // pred_fallthru
      _
    // Predicated region
    $region26: #{tpu_custom_call.1} parent=1 // pred_check
      _
    $region27: #{tpu_custom_call.1} parent=1 // pred_check_branch
      %29 = sbr.rel (0) target = $region29
    $region28: #{tpu_custom_call.1} parent=1 // pred_region
      _
    $region29: #{tpu_custom_call.1} parent=1 // pred_fallthru
      _
    %v30 = vld [vmem:[%s0] sm:$0xff]
    %v31 = vld [vmem:[%s0 + $0x8] sm:$0xff]
    %v32 = vld [vmem:[%s5] sm:$0xff]
    %v33 = vld [vmem:[%s5 + $0x8] sm:$0xff]
    %s34 = sld [smem:[#allocation2]]
    %v35 = vstv %s34
    %v36 = vrcp.pop %v35
    %s37 = vtos %v36
    %v38 = vld [vmem:[%s1] sm:$0xff]
    %v39 = vld [vmem:[%s1 + $0x8] sm:$0xff]
    %v40 = vld [vmem:[%s1 + $0x10] sm:$0xff]
    %v41 = vld [vmem:[%s1 + $0x18] sm:$0xff]
    %vm42 = vcmask 261120
    %v44 = vsel %vm42, %v30, 0
    %v47 = vsel %vm42, %v31, 0
    %49 = vmatprep.subr.mxu0 0.0
    %50 = vmatpush1.msra.mxu0 %v38
    %51 = vmatprep.subr.mxu0 0.0
    %52 = vmatpush1.msra.mxu0 %v39
    %53 = vmatprep.subr.mxu0 0.0
    %54 = vmatpush1.msra.mxu0 %v40
    %55 = vmatprep.subr.mxu0 0.0
    %56 = vmatpush1.msra.mxu0 %v41
    %57 = vmatprep.subr.mxu0 0.0
    %58 = vmatpush1.msra.mxu0 0.0
    %59 = vmatprep.subr.mxu0 0.0
    %60 = vmatpush1.msra.mxu0 0.0
    %61 = vmatprep.subr.mxu0 0.0
    %62 = vmatpush1.msra.mxu0 0.0
    %63 = vmatprep.subr.mxu0 0.0
    %64 = vmatpush1.msra.mxu0 0.0
    %65 = vmatprep.subr.mxu0 0.0
    %66 = vmatpush1.msra.mxu0 0.0
    %67 = vmatprep.subr.mxu0 0.0
    %68 = vmatpush1.msra.mxu0 0.0
    %69 = vmatprep.subr.mxu0 0.0
    %70 = vmatpush1.msra.mxu0 0.0
    %71 = vmatprep.subr.mxu0 0.0
    %72 = vmatpush1.msra.mxu0 0.0
    %73 = vmatprep.subr.mxu0 0.0
    %74 = vmatpush1.msra.mxu0 0.0
    %75 = vmatprep.subr.mxu0 0.0
    %76 = vmatpush1.msra.mxu0 0.0
    %77 = vmatprep.subr.mxu0 0.0
    %78 = vmatpush1.msra.mxu0 0.0
    %79 = vmatprep.subr.mxu0 0.0
    %80 = vmatpush1.msra.mxu0 0.0
    %81 = vmatprep.subr.mxu0 0.0
    %82 = vmatpush1.msra.mxu0 0.0
    %83 = vmatprep.subr.mxu0 0.0
    %84 = vmatpush1.msra.mxu0 0.0
    %85 = vmatprep.subr.mxu0 0.0
    %86 = vmatpush1.msra.mxu0 0.0
    %87 = vmatprep.subr.mxu0 0.0
    %88 = vmatpush1.msra.mxu0 0.0
    %89 = vmatprep.subr.mxu0 0.0
    %90 = vmatpush1.msra.mxu0 0.0
    %91 = vmatprep.subr.mxu0 0.0
    %92 = vmatpush1.msra.mxu0 0.0
    %93 = vmatprep.subr.mxu0 0.0
    %94 = vmatpush1.msra.mxu0 0.0
    %95 = vmatprep.subr.mxu0 0.0
    %96 = vmatpush1.msra.mxu0 0.0
    %97 = vmatprep.subr.mxu0 0.0
    %98 = vmatpush1.msra.mxu0 0.0
    %99 = vmatprep.subr.mxu0 0.0
    %100 = vmatpush1.msra.mxu0 0.0
    %101 = vmatprep.subr.mxu0 0.0
    %102 = vmatpush1.msra.mxu0 0.0
    %103 = vmatprep.subr.mxu0 0.0
    %104 = vmatpush1.msra.mxu0 0.0
    %105 = vmatprep.subr.mxu0 0.0
    %106 = vmatpush1.msra.mxu0 0.0
    %107 = vmatprep.subr.mxu0 0.0
    %108 = vmatpush1.msra.mxu0 0.0
    %109 = vmatprep.subr.mxu0 0.0
    %110 = vmatpush1.msra.mxu0 0.0
    %111 = vmatprep.subr.mxu0 0.0
    %112 = vmatpush1.msra.mxu0 0.0
    %113 = vmatprep.mubr.f32.mxu0 0.0
    %114 = vmatmul.mubr.f32.gmra.mrb[0].mxu0 %v44
    %v115 = vpop.f32.mrb[0].mxu0
    %v116 = vadd.f32 0.0, %v115
    %v117 = vpop.f32.mrb[0].mxu0
    %118 = vmatprep.mubr.f32.mxu0 0.0
    %119 = vmatmul.mubr.f32.gmra.mrb[0].mxu0 %v47
    %v120 = vpop.f32.mrb[0].mxu0
    %v121 = vadd.f32 0.0, %v120
    %v122 = vpop.f32.mrb[0].mxu0
    %123 = vdwg.mxu0
    %v124 = vld [vmem:[%s2] sm:$0xff]
    %v125 = vld [vmem:[%s2 + $0x8] sm:$0xff]
    %v126 = vld [vmem:[%s2 + $0x10] sm:$0xff]
    %v127 = vld [vmem:[%s2 + $0x18] sm:$0xff]
    %128 = vmatprep.subr.mxu0 0.0
    %129 = vmatpush1.msra.mxu0 %v124
    %130 = vmatprep.subr.mxu0 0.0
    %131 = vmatpush1.msra.mxu0 %v125
    %132 = vmatprep.subr.mxu0 0.0
    %133 = vmatpush1.msra.mxu0 %v126
    %134 = vmatprep.subr.mxu0 0.0
    %135 = vmatpush1.msra.mxu0 %v127
    %136 = vmatprep.subr.mxu0 0.0
    %137 = vmatpush1.msra.mxu0 0.0
    %138 = vmatprep.subr.mxu0 0.0
    %139 = vmatpush1.msra.mxu0 0.0
    %140 = vmatprep.subr.mxu0 0.0
    %141 = vmatpush1.msra.mxu0 0.0
    %142 = vmatprep.subr.mxu0 0.0
    %143 = vmatpush1.msra.mxu0 0.0
    %144 = vmatprep.subr.mxu0 0.0
    %145 = vmatpush1.msra.mxu0 0.0
    %146 = vmatprep.subr.mxu0 0.0
    %147 = vmatpush1.msra.mxu0 0.0
    %148 = vmatprep.subr.mxu0 0.0
    %149 = vmatpush1.msra.mxu0 0.0
    %150 = vmatprep.subr.mxu0 0.0
    %151 = vmatpush1.msra.mxu0 0.0
    %152 = vmatprep.subr.mxu0 0.0
    %153 = vmatpush1.msra.mxu0 0.0
    %154 = vmatprep.subr.mxu0 0.0
    %155 = vmatpush1.msra.mxu0 0.0
    %156 = vmatprep.subr.mxu0 0.0
    %157 = vmatpush1.msra.mxu0 0.0
    %158 = vmatprep.subr.mxu0 0.0
    %159 = vmatpush1.msra.mxu0 0.0
    %160 = vmatprep.subr.mxu0 0.0
    %161 = vmatpush1.msra.mxu0 0.0
    %162 = vmatprep.subr.mxu0 0.0
    %163 = vmatpush1.msra.mxu0 0.0
    %164 = vmatprep.subr.mxu0 0.0
    %165 = vmatpush1.msra.mxu0 0.0
    %166 = vmatprep.subr.mxu0 0.0
    %167 = vmatpush1.msra.mxu0 0.0
    %168 = vmatprep.subr.mxu0 0.0
    %169 = vmatpush1.msra.mxu0 0.0
    %170 = vmatprep.subr.mxu0 0.0
    %171 = vmatpush1.msra.mxu0 0.0
    %172 = vmatprep.subr.mxu0 0.0
    %173 = vmatpush1.msra.mxu0 0.0
    %174 = vmatprep.subr.mxu0 0.0
    %175 = vmatpush1.msra.mxu0 0.0
    %176 = vmatprep.subr.mxu0 0.0
    %177 = vmatpush1.msra.mxu0 0.0
    %178 = vmatprep.subr.mxu0 0.0
    %179 = vmatpush1.msra.mxu0 0.0
    %180 = vmatprep.subr.mxu0 0.0
    %181 = vmatpush1.msra.mxu0 0.0
    %182 = vmatprep.subr.mxu0 0.0
    %183 = vmatpush1.msra.mxu0 0.0
    %184 = vmatprep.subr.mxu0 0.0
    %185 = vmatpush1.msra.mxu0 0.0
    %186 = vmatprep.subr.mxu0 0.0
    %187 = vmatpush1.msra.mxu0 0.0
    %188 = vmatprep.subr.mxu0 0.0
    %189 = vmatpush1.msra.mxu0 0.0
    %190 = vmatprep.subr.mxu0 0.0
    %191 = vmatpush1.msra.mxu0 0.0
    %192 = vmatprep.mubr.f32.mxu0 0.0
    %193 = vmatmul.mubr.f32.gmra.mrb[0].mxu0 %v44
    %v194 = vpop.f32.mrb[0].mxu0
    %v195 = vadd.f32 0.0, %v194
    %v196 = vpop.f32.mrb[0].mxu0
    %197 = vmatprep.mubr.f32.mxu0 0.0
    %198 = vmatmul.mubr.f32.gmra.mrb[0].mxu0 %v47
    %v199 = vpop.f32.mrb[0].mxu0
    %v200 = vadd.f32 0.0, %v199
    %v201 = vpop.f32.mrb[0].mxu0
    %202 = vdwg.mxu0
    %v203 = vld [vmem:[%s3] sm:$0xff]
    %v204 = vld [vmem:[%s3 + $0x8] sm:$0xff]
    %v205 = vld [vmem:[%s3 + $0x10] sm:$0xff]
    %v206 = vld [vmem:[%s3 + $0x18] sm:$0xff]
    %v207 = vld [vmem:[%s3 + $0x20] sm:$0xff]
    %v208 = vld [vmem:[%s3 + $0x28] sm:$0xff]
    %v209 = vld [vmem:[%s3 + $0x30] sm:$0xff]
    %v210 = vld [vmem:[%s3 + $0x38] sm:$0xff]
    %v211 = vld [vmem:[%s4] sm:$0xff]
    %v212 = vld [vmem:[%s4 + $0x8] sm:$0xff]
    %v213 = vld [vmem:[%s4 + $0x10] sm:$0xff]
    %v214 = vld [vmem:[%s4 + $0x18] sm:$0xff]
    %v215 = vld [vmem:[%s4 + $0x20] sm:$0xff]
    %v216 = vld [vmem:[%s4 + $0x28] sm:$0xff]
    %v217 = vld [vmem:[%s4 + $0x30] sm:$0xff]
    %v218 = vld [vmem:[%s4 + $0x38] sm:$0xff]
    %vm219 = vcmask 130048
    %v221 = vsel %vm219, %v195, 0
    %v224 = vsel %vm219, %v200, 0
    %226 = vmatprep.subr.mxu0 0.0
    %227 = vmatpush1.msra.mxu0 %v203
    %228 = vmatprep.subr.mxu0 0.0
    %229 = vmatpush1.msra.mxu0 %v204
    %230 = vmatprep.subr.mxu0 0.0
    %231 = vmatpush1.msra.mxu0 0.0
    %232 = vmatprep.subr.mxu0 0.0
    %233 = vmatpush1.msra.mxu0 0.0
    %234 = vmatprep.subr.mxu0 0.0
    %235 = vmatpush1.msra.mxu0 0.0
    %236 = vmatprep.subr.mxu0 0.0
    %237 = vmatpush1.msra.mxu0 0.0
    %238 = vmatprep.subr.mxu0 0.0
    %239 = vmatpush1.msra.mxu0 0.0
    %240 = vmatprep.subr.mxu0 0.0
    %241 = vmatpush1.msra.mxu0 0.0
    %242 = vmatprep.subr.mxu0 0.0
    %243 = vmatpush1.msra.mxu0 0.0
    %244 = vmatprep.subr.mxu0 0.0
    %245 = vmatpush1.msra.mxu0 0.0
    %246 = vmatprep.subr.mxu0 0.0
    %247 = vmatpush1.msra.mxu0 0.0
    %248 = vmatprep.subr.mxu0 0.0
    %249 = vmatpush1.msra.mxu0 0.0
    %250 = vmatprep.subr.mxu0 0.0
    %251 = vmatpush1.msra.mxu0 0.0
    %252 = vmatprep.subr.mxu0 0.0
    %253 = vmatpush1.msra.mxu0 0.0
    %254 = vmatprep.subr.mxu0 0.0
    %255 = vmatpush1.msra.mxu0 0.0
    %256 = vmatprep.subr.mxu0 0.0
    %257 = vmatpush1.msra.mxu0 0.0
    %258 = vmatprep.subr.mxu0 0.0
    %259 = vmatpush1.msra.mxu0 0.0
    %260 = vmatprep.subr.mxu0 0.0
    %261 = vmatpush1.msra.mxu0 0.0
    %262 = vmatprep.subr.mxu0 0.0
    %263 = vmatpush1.msra.mxu0 0.0
    %264 = vmatprep.subr.mxu0 0.0
    %265 = vmatpush1.msra.mxu0 0.0
    %266 = vmatprep.subr.mxu0 0.0
    %267 = vmatpush1.msra.mxu0 0.0
    %268 = vmatprep.subr.mxu0 0.0
    %269 = vmatpush1.msra.mxu0 0.0
    %270 = vmatprep.subr.mxu0 0.0
    %271 = vmatpush1.msra.mxu0 0.0
    %272 = vmatprep.subr.mxu0 0.0
    %273 = vmatpush1.msra.mxu0 0.0
    %274 = vmatprep.subr.mxu0 0.0
    %275 = vmatpush1.msra.mxu0 0.0
    %276 = vmatprep.subr.mxu0 0.0
    %277 = vmatpush1.msra.mxu0 0.0
    %278 = vmatprep.subr.mxu0 0.0
    %279 = vmatpush1.msra.mxu0 0.0
    %280 = vmatprep.subr.mxu0 0.0
    %281 = vmatpush1.msra.mxu0 0.0
    %282 = vmatprep.subr.mxu0 0.0
    %283 = vmatpush1.msra.mxu0 0.0
    %284 = vmatprep.subr.mxu0 0.0
    %285 = vmatpush1.msra.mxu0 0.0
    %286 = vmatprep.subr.mxu0 0.0
    %287 = vmatpush1.msra.mxu0 0.0
    %288 = vmatprep.subr.mxu0 0.0
    %289 = vmatpush1.msra.mxu0 0.0
    %290 = vmatprep.mubr.f32.mxu0 0.0
    %291 = vmatmul.mubr.f32.gmra.mrb[0].mxu0 %v221
    %v292 = vpop.f32.mrb[0].mxu0
    %v293 = vadd.f32 0.0, %v292
    %v294 = vpop.f32.mrb[0].mxu0
    %295 = vmatprep.mubr.f32.mxu0 0.0
    %296 = vmatmul.mubr.f32.gmra.mrb[0].mxu0 %v224
    %v297 = vpop.f32.mrb[0].mxu0
    %v298 = vadd.f32 0.0, %v297
    %v299 = vpop.f32.mrb[0].mxu0
    %300 = vdwg.mxu0
    %v302 = vsel %vm219, %v116, 0
    %v305 = vsel %vm219, %v121, 0
    %307 = vmatprep.subr.mxu0 0.0
    %308 = vmatpush1.msra.mxu0 %v211
    %309 = vmatprep.subr.mxu0 0.0
    %310 = vmatpush1.msra.mxu0 %v212
    %311 = vmatprep.subr.mxu0 0.0
    %312 = vmatpush1.msra.mxu0 0.0
    %313 = vmatprep.subr.mxu0 0.0
    %314 = vmatpush1.msra.mxu0 0.0
    %315 = vmatprep.subr.mxu0 0.0
    %316 = vmatpush1.msra.mxu0 0.0
    %317 = vmatprep.subr.mxu0 0.0
    %318 = vmatpush1.msra.mxu0 0.0
    %319 = vmatprep.subr.mxu0 0.0
    %320 = vmatpush1.msra.mxu0 0.0
    %321 = vmatprep.subr.mxu0 0.0
    %322 = vmatpush1.msra.mxu0 0.0
    %323 = vmatprep.subr.mxu0 0.0
    %324 = vmatpush1.msra.mxu0 0.0
    %325 = vmatprep.subr.mxu0 0.0
    %326 = vmatpush1.msra.mxu0 0.0
    %327 = vmatprep.subr.mxu0 0.0
    %328 = vmatpush1.msra.mxu0 0.0
    %329 = vmatprep.subr.mxu0 0.0
    %330 = vmatpush1.msra.mxu0 0.0
    %331 = vmatprep.subr.mxu0 0.0
    %332 = vmatpush1.msra.mxu0 0.0
    %333 = vmatprep.subr.mxu0 0.0
    %334 = vmatpush1.msra.mxu0 0.0
    %335 = vmatprep.subr.mxu0 0.0
    %336 = vmatpush1.msra.mxu0 0.0
    %337 = vmatprep.subr.mxu0 0.0
    %338 = vmatpush1.msra.mxu0 0.0
    %339 = vmatprep.subr.mxu0 0.0
    %340 = vmatpush1.msra.mxu0 0.0
    %341 = vmatprep.subr.mxu0 0.0
    %342 = vmatpush1.msra.mxu0 0.0
    %343 = vmatprep.subr.mxu0 0.0
    %344 = vmatpush1.msra.mxu0 0.0
    %345 = vmatprep.subr.mxu0 0.0
    %346 = vmatpush1.msra.mxu0 0.0
    %347 = vmatprep.subr.mxu0 0.0
    %348 = vmatpush1.msra.mxu0 0.0
    %349 = vmatprep.subr.mxu0 0.0
    %350 = vmatpush1.msra.mxu0 0.0
    %351 = vmatprep.subr.mxu0 0.0
    %352 = vmatpush1.msra.mxu0 0.0
    %353 = vmatprep.subr.mxu0 0.0
    %354 = vmatpush1.msra.mxu0 0.0
    %355 = vmatprep.subr.mxu0 0.0
    %356 = vmatpush1.msra.mxu0 0.0
    %357 = vmatprep.subr.mxu0 0.0
    %358 = vmatpush1.msra.mxu0 0.0
    %359 = vmatprep.subr.mxu0 0.0
    %360 = vmatpush1.msra.mxu0 0.0
    %361 = vmatprep.subr.mxu0 0.0
    %362 = vmatpush1.msra.mxu0 0.0
    %363 = vmatprep.subr.mxu0 0.0
    %364 = vmatpush1.msra.mxu0 0.0
    %365 = vmatprep.subr.mxu0 0.0
    %366 = vmatpush1.msra.mxu0 0.0
    %367 = vmatprep.subr.mxu0 0.0
    %368 = vmatpush1.msra.mxu0 0.0
    %369 = vmatprep.subr.mxu0 0.0
    %370 = vmatpush1.msra.mxu0 0.0
    %371 = vmatprep.mubr.f32.mxu0 0.0
    %372 = vmatmul.mubr.f32.gmra.mrb[0].mxu0 %v302
    %v373 = vpop.f32.mrb[0].mxu0
    %v374 = vadd.f32 0.0, %v373
    %v375 = vpop.f32.mrb[0].mxu0
    %376 = vmatprep.mubr.f32.mxu0 0.0
    %377 = vmatmul.mubr.f32.gmra.mrb[0].mxu0 %v305
    %v378 = vpop.f32.mrb[0].mxu0
    %v379 = vadd.f32 0.0, %v378
    %v380 = vpop.f32.mrb[0].mxu0
    %381 = vdwg.mxu0
    %382 = vmatprep.subr.mxu0 0.0
    %383 = vmatpush1.xpose.msra.mxu0 %v221
    %384 = vmatprep.subr.mxu0 0.0
    %385 = vmatpush1.xpose.msra.mxu0 %v224
    %386 = vmatprep.subr.mxu0 0.0
    %387 = vmatpush1.xpose.msra.mxu0 0.0
    %388 = vmatprep.subr.mxu0 0.0
    %389 = vmatpush1.xpose.msra.mxu0 0.0
    %390 = vmatprep.subr.mxu0 0.0
    %391 = vmatpush1.xpose.msra.mxu0 0.0
    %392 = vmatprep.subr.mxu0 0.0
    %393 = vmatpush1.xpose.msra.mxu0 0.0
    %394 = vmatprep.subr.mxu0 0.0
    %395 = vmatpush1.xpose.msra.mxu0 0.0
    %396 = vmatprep.subr.mxu0 0.0
    %397 = vmatpush1.xpose.msra.mxu0 0.0
    %398 = vmatprep.subr.mxu0 0.0
    %399 = vmatpush1.xpose.msra.mxu0 0.0
    %400 = vmatprep.subr.mxu0 0.0
    %401 = vmatpush1.xpose.msra.mxu0 0.0
    %402 = vmatprep.subr.mxu0 0.0
    %403 = vmatpush1.xpose.msra.mxu0 0.0
    %404 = vmatprep.subr.mxu0 0.0
    %405 = vmatpush1.xpose.msra.mxu0 0.0
    %406 = vmatprep.subr.mxu0 0.0
    %407 = vmatpush1.xpose.msra.mxu0 0.0
    %408 = vmatprep.subr.mxu0 0.0
    %409 = vmatpush1.xpose.msra.mxu0 0.0
    %410 = vmatprep.subr.mxu0 0.0
    %411 = vmatpush1.xpose.msra.mxu0 0.0
    %412 = vmatprep.subr.mxu0 0.0
    %413 = vmatpush1.xpose.msra.mxu0 0.0
    %414 = vmatprep.subr.mxu0 0.0
    %415 = vmatpush1.xpose.msra.mxu0 0.0
    %416 = vmatprep.subr.mxu0 0.0
    %417 = vmatpush1.xpose.msra.mxu0 0.0
    %418 = vmatprep.subr.mxu0 0.0
    %419 = vmatpush1.xpose.msra.mxu0 0.0
    %420 = vmatprep.subr.mxu0 0.0
    %421 = vmatpush1.xpose.msra.mxu0 0.0
    %422 = vmatprep.subr.mxu0 0.0
    %423 = vmatpush1.xpose.msra.mxu0 0.0
    %424 = vmatprep.subr.mxu0 0.0
    %425 = vmatpush1.xpose.msra.mxu0 0.0
    %426 = vmatprep.subr.mxu0 0.0
    %427 = vmatpush1.xpose.msra.mxu0 0.0
    %428 = vmatprep.subr.mxu0 0.0
    %429 = vmatpush1.xpose.msra.mxu0 0.0
    %430 = vmatprep.subr.mxu0 0.0
    %431 = vmatpush1.xpose.msra.mxu0 0.0
    %432 = vmatprep.subr.mxu0 0.0
    %433 = vmatpush1.xpose.msra.mxu0 0.0
    %434 = vmatprep.subr.mxu0 0.0
    %435 = vmatpush1.xpose.msra.mxu0 0.0
    %436 = vmatprep.subr.mxu0 0.0
    %437 = vmatpush1.xpose.msra.mxu0 0.0
    %438 = vmatprep.subr.mxu0 0.0
    %439 = vmatpush1.xpose.msra.mxu0 0.0
    %440 = vmatprep.subr.mxu0 0.0
    %441 = vmatpush1.xpose.msra.mxu0 0.0
    %442 = vmatprep.subr.mxu0 0.0
    %443 = vmatpush1.xpose.msra.mxu0 0.0
    %444 = vmatprep.subr.mxu0 0.0
    %445 = vmatpush1.xpose.msra.mxu0 0.0
    %446 = vmatprep.mubr.f32.mxu0 0.0
    %447 = vmatmul.mubr.f32.gmra.mrb[0].mxu0 %v302
    %v448 = vpop.f32.mrb[0].mxu0
    %v449 = vadd.f32 0.0, %v448
    %v450 = vpop.f32.mrb[0].mxu0
    %451 = vmatprep.mubr.f32.mxu0 0.0
    %452 = vmatmul.mubr.f32.gmra.mrb[0].mxu0 %v305
    %v453 = vpop.f32.mrb[0].mxu0
    %v454 = vadd.f32 0.0, %v453
    %v455 = vpop.f32.mrb[0].mxu0
    %456 = vdwg.mxu0
    %v457 = vstv %s37
    %v458 = vmul.f32 %v449, %v457
    %v459 = vmul.f32 %v454, %v457
    %v460 = vmax.f32 %v458, -5.0
    %v461 = vmax.f32 %v459, -5.0
    %v462 = vmin.f32 %v460, 5.0
    %v463 = vmin.f32 %v461, 5.0
    %v464 = vmul.f32 %v462, 1.442695
    %v465 = vpow.pop %v464
    %v466 = vmul.f32 %v463, 1.442695
    %v467 = vpow.pop %v466
    %v468 = vmul.f32 %v465, %v32
    %v469 = vmul.f32 %v467, %v33
    %v470 = vsel %vm219, %v468, 0.0
    %471 = vadd.xlane.f32.xlu0 %v470
    %v472 = vpop.xlane.xlu0 %471
    %v473 = vsel %vm219, %v469, 0.0
    %474 = vadd.xlane.f32.xlu0 %v473
    %v475 = vpop.xlane.xlu0 %474
    %v476 = vrcp.pop %v472
    %v477 = vrcp.pop %v475
    %v479 = vsel %vm219, %v468, 0
    %v482 = vsel %vm219, %v469, 0
    %484 = vmatprep.subr.mxu0 0.0
    %485 = vmatpush1.msra.mxu0 %v293
    %486 = vmatprep.subr.mxu0 0.0
    %487 = vmatpush1.msra.mxu0 %v298
    %488 = vmatprep.subr.mxu0 0.0
    %489 = vmatpush1.msra.mxu0 0.0
    %490 = vmatprep.subr.mxu0 0.0
    %491 = vmatpush1.msra.mxu0 0.0
    %492 = vmatprep.subr.mxu0 0.0
    %493 = vmatpush1.msra.mxu0 0.0
    %494 = vmatprep.subr.mxu0 0.0
    %495 = vmatpush1.msra.mxu0 0.0
    %496 = vmatprep.subr.mxu0 0.0
    %497 = vmatpush1.msra.mxu0 0.0
    %498 = vmatprep.subr.mxu0 0.0
    %499 = vmatpush1.msra.mxu0 0.0
    %500 = vmatprep.subr.mxu0 0.0
    %501 = vmatpush1.msra.mxu0 0.0
    %502 = vmatprep.subr.mxu0 0.0
    %503 = vmatpush1.msra.mxu0 0.0
    %504 = vmatprep.subr.mxu0 0.0
    %505 = vmatpush1.msra.mxu0 0.0
    %506 = vmatprep.subr.mxu0 0.0
    %507 = vmatpush1.msra.mxu0 0.0
    %508 = vmatprep.subr.mxu0 0.0
    %509 = vmatpush1.msra.mxu0 0.0
    %510 = vmatprep.subr.mxu0 0.0
    %511 = vmatpush1.msra.mxu0 0.0
    %512 = vmatprep.subr.mxu0 0.0
    %513 = vmatpush1.msra.mxu0 0.0
    %514 = vmatprep.subr.mxu0 0.0
    %515 = vmatpush1.msra.mxu0 0.0
    %516 = vmatprep.subr.mxu0 0.0
    %517 = vmatpush1.msra.mxu0 0.0
    %518 = vmatprep.subr.mxu0 0.0
    %519 = vmatpush1.msra.mxu0 0.0
    %520 = vmatprep.subr.mxu0 0.0
    %521 = vmatpush1.msra.mxu0 0.0
    %522 = vmatprep.subr.mxu0 0.0
    %523 = vmatpush1.msra.mxu0 0.0
    %524 = vmatprep.subr.mxu0 0.0
    %525 = vmatpush1.msra.mxu0 0.0
    %526 = vmatprep.subr.mxu0 0.0
    %527 = vmatpush1.msra.mxu0 0.0
    %528 = vmatprep.subr.mxu0 0.0
    %529 = vmatpush1.msra.mxu0 0.0
    %530 = vmatprep.subr.mxu0 0.0
    %531 = vmatpush1.msra.mxu0 0.0
    %532 = vmatprep.subr.mxu0 0.0
    %533 = vmatpush1.msra.mxu0 0.0
    %534 = vmatprep.subr.mxu0 0.0
    %535 = vmatpush1.msra.mxu0 0.0
    %536 = vmatprep.subr.mxu0 0.0
    %537 = vmatpush1.msra.mxu0 0.0
    %538 = vmatprep.subr.mxu0 0.0
    %539 = vmatpush1.msra.mxu0 0.0
    %540 = vmatprep.subr.mxu0 0.0
    %541 = vmatpush1.msra.mxu0 0.0
    %542 = vmatprep.subr.mxu0 0.0
    %543 = vmatpush1.msra.mxu0 0.0
    %544 = vmatprep.subr.mxu0 0.0
    %545 = vmatpush1.msra.mxu0 0.0
    %546 = vmatprep.subr.mxu0 0.0
    %547 = vmatpush1.msra.mxu0 0.0
    %548 = vmatprep.mubr.f32.mxu0 0.0
    %549 = vmatmul.mubr.f32.gmra.mrb[0].mxu0 %v479
    %v550 = vpop.f32.mrb[0].mxu0
    %v551 = vadd.f32 0.0, %v550
    %v552 = vpop.f32.mrb[0].mxu0
    %553 = vmatprep.mubr.f32.mxu0 0.0
    %554 = vmatmul.mubr.f32.gmra.mrb[0].mxu0 %v482
    %v555 = vpop.f32.mrb[0].mxu0
    %v556 = vadd.f32 0.0, %v555
    %v557 = vpop.f32.mrb[0].mxu0
    %558 = vdwg.mxu0
    %559 = vxpose.xlu0.b32.start [1/16] %v465, 128
    %560 = vxpose.xlu0.b32.cont [2/16] %v467, 128
    %561 = vxpose.xlu0.b32.cont [3/16] 0.0, 128
    %562 = vxpose.xlu0.b32.cont [4/16] 0.0, 128
    %563 = vxpose.xlu0.b32.cont [5/16] 0.0, 128
    %564 = vxpose.xlu0.b32.cont [6/16] 0.0, 128
    %565 = vxpose.xlu0.b32.cont [7/16] 0.0, 128
    %566 = vxpose.xlu0.b32.cont [8/16] 0.0, 128
    %567 = vxpose.xlu0.b32.cont [9/16] 0.0, 128
    %568 = vxpose.xlu0.b32.cont [10/16] 0.0, 128
    %569 = vxpose.xlu0.b32.cont [11/16] 0.0, 128
    %570 = vxpose.xlu0.b32.cont [12/16] 0.0, 128
    %571 = vxpose.xlu0.b32.cont [13/16] 0.0, 128
    %572 = vxpose.xlu0.b32.cont [14/16] 0.0, 128
    %573 = vxpose.xlu0.b32.cont [15/16] 0.0, 128
    %574 = vxpose.xlu0.b32.end [16/16] 0.0, 128
    %v575 = vpop.trf.xlu0
    %v576 = vpop.trf.xlu0
    %v577 = vpop.trf.xlu0
    %v578 = vpop.trf.xlu0
    %v579 = vpop.trf.xlu0
    %v580 = vpop.trf.xlu0
    %v581 = vpop.trf.xlu0
    %v582 = vpop.trf.xlu0
    %v583 = vpop.trf.xlu0
    %v584 = vpop.trf.xlu0
    %v585 = vpop.trf.xlu0
    %v586 = vpop.trf.xlu0
    %v587 = vpop.trf.xlu0
    %v588 = vpop.trf.xlu0
    %v589 = vpop.trf.xlu0
    %v590 = vpop.trf.xlu0
    %v591 = vmul.f32 %v575, %v32
    %v592 = vmul.f32 %v576, %v33
    %v593 = vmul.f32 %v374, %v476
    %v594 = vmul.f32 %v379, %v477
    %v596 = vsel %vm219, %v591, 0
    %v599 = vsel %vm219, %v592, 0
    %601 = vmatprep.subr.mxu0 0.0
    %602 = vmatpush1.msra.mxu0 %v593
    %603 = vmatprep.subr.mxu0 0.0
    %604 = vmatpush1.msra.mxu0 %v594
    %605 = vmatprep.subr.mxu0 0.0
    %606 = vmatpush1.msra.mxu0 0.0
    %607 = vmatprep.subr.mxu0 0.0
    %608 = vmatpush1.msra.mxu0 0.0
    %609 = vmatprep.subr.mxu0 0.0
    %610 = vmatpush1.msra.mxu0 0.0
    %611 = vmatprep.subr.mxu0 0.0
    %612 = vmatpush1.msra.mxu0 0.0
    %613 = vmatprep.subr.mxu0 0.0
    %614 = vmatpush1.msra.mxu0 0.0
    %615 = vmatprep.subr.mxu0 0.0
    %616 = vmatpush1.msra.mxu0 0.0
    %617 = vmatprep.subr.mxu0 0.0
    %618 = vmatpush1.msra.mxu0 0.0
    %619 = vmatprep.subr.mxu0 0.0
    %620 = vmatpush1.msra.mxu0 0.0
    %621 = vmatprep.subr.mxu0 0.0
    %622 = vmatpush1.msra.mxu0 0.0
    %623 = vmatprep.subr.mxu0 0.0
    %624 = vmatpush1.msra.mxu0 0.0
    %625 = vmatprep.subr.mxu0 0.0
    %626 = vmatpush1.msra.mxu0 0.0
    %627 = vmatprep.subr.mxu0 0.0
    %628 = vmatpush1.msra.mxu0 0.0
    %629 = vmatprep.subr.mxu0 0.0
    %630 = vmatpush1.msra.mxu0 0.0
    %631 = vmatprep.subr.mxu0 0.0
    %632 = vmatpush1.msra.mxu0 0.0
    %633 = vmatprep.subr.mxu0 0.0
    %634 = vmatpush1.msra.mxu0 0.0
    %635 = vmatprep.subr.mxu0 0.0
    %636 = vmatpush1.msra.mxu0 0.0
    %637 = vmatprep.subr.mxu0 0.0
    %638 = vmatpush1.msra.mxu0 0.0
    %639 = vmatprep.subr.mxu0 0.0
    %640 = vmatpush1.msra.mxu0 0.0
    %641 = vmatprep.subr.mxu0 0.0
    %642 = vmatpush1.msra.mxu0 0.0
    %643 = vmatprep.subr.mxu0 0.0
    %644 = vmatpush1.msra.mxu0 0.0
    %645 = vmatprep.subr.mxu0 0.0
    %646 = vmatpush1.msra.mxu0 0.0
    %647 = vmatprep.subr.mxu0 0.0
    %648 = vmatpush1.msra.mxu0 0.0
    %649 = vmatprep.subr.mxu0 0.0
    %650 = vmatpush1.msra.mxu0 0.0
    %651 = vmatprep.subr.mxu0 0.0
    %652 = vmatpush1.msra.mxu0 0.0
    %653 = vmatprep.subr.mxu0 0.0
    %654 = vmatpush1.msra.mxu0 0.0
    %655 = vmatprep.subr.mxu0 0.0
    %656 = vmatpush1.msra.mxu0 0.0
    %657 = vmatprep.subr.mxu0 0.0
    %658 = vmatpush1.msra.mxu0 0.0
    %659 = vmatprep.subr.mxu0 0.0
    %660 = vmatpush1.msra.mxu0 0.0
    %661 = vmatprep.subr.mxu0 0.0
    %662 = vmatpush1.msra.mxu0 0.0
    %663 = vmatprep.subr.mxu0 0.0
    %664 = vmatpush1.msra.mxu0 0.0
    %665 = vmatprep.mubr.f32.mxu0 0.0
    %666 = vmatmul.mubr.f32.gmra.mrb[0].mxu0 %v596
    %v667 = vpop.f32.mrb[0].mxu0
    %v668 = vadd.f32 0.0, %v667
    %v669 = vpop.f32.mrb[0].mxu0
    %670 = vmatprep.mubr.f32.mxu0 0.0
    %671 = vmatmul.mubr.f32.gmra.mrb[0].mxu0 %v599
    %v672 = vpop.f32.mrb[0].mxu0
    %v673 = vadd.f32 0.0, %v672
    %v674 = vpop.f32.mrb[0].mxu0
    %675 = vdwg.mxu0
    %v676 = vmul.f32 %v551, %v476
    %v677 = vmul.f32 %v556, %v477
    %v678 = vadd.f32 %v676, 0.0
    %v679 = vadd.f32 %v677, 0.0
    %v680 = vadd.f32 %v678, %v668
    %v681 = vadd.f32 %v679, %v673
    %v682 = vlog2.pop %v472
    %v683 = vmul.f32 %v682, 0.6931472
    %v684 = vlog2.pop %v475
    %v685 = vmul.f32 %v684, 0.6931472
    %v686 = vstv %s34
    %v687 = vmul.f32 %v686, %v683
    %v688 = vmul.f32 %v686, %v685
    %v689 = vadd.f32 %v687, 0.0
    %v690 = vadd.f32 %v688, 0.0
    %691 = vrot.lane.b32.xlu0 %v195, 112
    %v692 = vpop.permute.xlu0 %691
    %693 = vrot.lane.b32.xlu0 %v200, 112
    %v694 = vpop.permute.xlu0 %693
    %v695 = vsel %vm219, %v692, 0
    %v697 = vsel %vm219, %v694, 0
    %699 = vmatprep.subr.mxu0 0.0
    %700 = vmatpush1.msra.mxu0 %v205
    %701 = vmatprep.subr.mxu0 0.0
    %702 = vmatpush1.msra.mxu0 %v206
    %703 = vmatprep.subr.mxu0 0.0
    %704 = vmatpush1.msra.mxu0 0.0
    %705 = vmatprep.subr.mxu0 0.0
    %706 = vmatpush1.msra.mxu0 0.0
    %707 = vmatprep.subr.mxu0 0.0
    %708 = vmatpush1.msra.mxu0 0.0
    %709 = vmatprep.subr.mxu0 0.0
    %710 = vmatpush1.msra.mxu0 0.0
    %711 = vmatprep.subr.mxu0 0.0
    %712 = vmatpush1.msra.mxu0 0.0
    %713 = vmatprep.subr.mxu0 0.0
    %714 = vmatpush1.msra.mxu0 0.0
    %715 = vmatprep.subr.mxu0 0.0
    %716 = vmatpush1.msra.mxu0 0.0
    %717 = vmatprep.subr.mxu0 0.0
    %718 = vmatpush1.msra.mxu0 0.0
    %719 = vmatprep.subr.mxu0 0.0
    %720 = vmatpush1.msra.mxu0 0.0
    %721 = vmatprep.subr.mxu0 0.0
    %722 = vmatpush1.msra.mxu0 0.0
    %723 = vmatprep.subr.mxu0 0.0
    %724 = vmatpush1.msra.mxu0 0.0
    %725 = vmatprep.subr.mxu0 0.0
    %726 = vmatpush1.msra.mxu0 0.0
    %727 = vmatprep.subr.mxu0 0.0
    %728 = vmatpush1.msra.mxu0 0.0
    %729 = vmatprep.subr.mxu0 0.0
    %730 = vmatpush1.msra.mxu0 0.0
    %731 = vmatprep.subr.mxu0 0.0
    %732 = vmatpush1.msra.mxu0 0.0
    %733 = vmatprep.subr.mxu0 0.0
    %734 = vmatpush1.msra.mxu0 0.0
    %735 = vmatprep.subr.mxu0 0.0
    %736 = vmatpush1.msra.mxu0 0.0
    %737 = vmatprep.subr.mxu0 0.0
    %738 = vmatpush1.msra.mxu0 0.0
    %739 = vmatprep.subr.mxu0 0.0
    %740 = vmatpush1.msra.mxu0 0.0
    %741 = vmatprep.subr.mxu0 0.0
    %742 = vmatpush1.msra.mxu0 0.0
    %743 = vmatprep.subr.mxu0 0.0
    %744 = vmatpush1.msra.mxu0 0.0
    %745 = vmatprep.subr.mxu0 0.0
    %746 = vmatpush1.msra.mxu0 0.0
    %747 = vmatprep.subr.mxu0 0.0
    %748 = vmatpush1.msra.mxu0 0.0
    %749 = vmatprep.subr.mxu0 0.0
    %750 = vmatpush1.msra.mxu0 0.0
    %751 = vmatprep.subr.mxu0 0.0
    %752 = vmatpush1.msra.mxu0 0.0
    %753 = vmatprep.subr.mxu0 0.0
    %754 = vmatpush1.msra.mxu0 0.0
    %755 = vmatprep.subr.mxu0 0.0
    %756 = vmatpush1.msra.mxu0 0.0
    %757 = vmatprep.subr.mxu0 0.0
    %758 = vmatpush1.msra.mxu0 0.0
    %759 = vmatprep.subr.mxu0 0.0
    %760 = vmatpush1.msra.mxu0 0.0
    %761 = vmatprep.subr.mxu0 0.0
    %762 = vmatpush1.msra.mxu0 0.0
    %763 = vmatprep.mubr.f32.mxu0 0.0
    %764 = vmatmul.mubr.f32.gmra.mrb[0].mxu0 %v695
    %v765 = vpop.f32.mrb[0].mxu0
    %v766 = vadd.f32 0.0, %v765
    %v767 = vpop.f32.mrb[0].mxu0
    %768 = vmatprep.mubr.f32.mxu0 0.0
    %769 = vmatmul.mubr.f32.gmra.mrb[0].mxu0 %v697
    %v770 = vpop.f32.mrb[0].mxu0
    %v771 = vadd.f32 0.0, %v770
    %v772 = vpop.f32.mrb[0].mxu0
    %773 = vdwg.mxu0
    %774 = vrot.lane.b32.xlu0 %v116, 112
    %v775 = vpop.permute.xlu0 %774
    %776 = vrot.lane.b32.xlu0 %v121, 112
    %v777 = vpop.permute.xlu0 %776
    %v778 = vsel %vm219, %v775, 0
    %v780 = vsel %vm219, %v777, 0
    %782 = vmatprep.subr.mxu0 0.0
    %783 = vmatpush1.msra.mxu0 %v213
    %784 = vmatprep.subr.mxu0 0.0
    %785 = vmatpush1.msra.mxu0 %v214
    %786 = vmatprep.subr.mxu0 0.0
    %787 = vmatpush1.msra.mxu0 0.0
    %788 = vmatprep.subr.mxu0 0.0
    %789 = vmatpush1.msra.mxu0 0.0
    %790 = vmatprep.subr.mxu0 0.0
    %791 = vmatpush1.msra.mxu0 0.0
    %792 = vmatprep.subr.mxu0 0.0
    %793 = vmatpush1.msra.mxu0 0.0
    %794 = vmatprep.subr.mxu0 0.0
    %795 = vmatpush1.msra.mxu0 0.0
    %796 = vmatprep.subr.mxu0 0.0
    %797 = vmatpush1.msra.mxu0 0.0
    %798 = vmatprep.subr.mxu0 0.0
    %799 = vmatpush1.msra.mxu0 0.0
    %800 = vmatprep.subr.mxu0 0.0
    %801 = vmatpush1.msra.mxu0 0.0
    %802 = vmatprep.subr.mxu0 0.0
    %803 = vmatpush1.msra.mxu0 0.0
    %804 = vmatprep.subr.mxu0 0.0
    %805 = vmatpush1.msra.mxu0 0.0
    %806 = vmatprep.subr.mxu0 0.0
    %807 = vmatpush1.msra.mxu0 0.0
    %808 = vmatprep.subr.mxu0 0.0
    %809 = vmatpush1.msra.mxu0 0.0
    %810 = vmatprep.subr.mxu0 0.0
    %811 = vmatpush1.msra.mxu0 0.0
    %812 = vmatprep.subr.mxu0 0.0
    %813 = vmatpush1.msra.mxu0 0.0
    %814 = vmatprep.subr.mxu0 0.0
    %815 = vmatpush1.msra.mxu0 0.0
    %816 = vmatprep.subr.mxu0 0.0
    %817 = vmatpush1.msra.mxu0 0.0
    %818 = vmatprep.subr.mxu0 0.0
    %819 = vmatpush1.msra.mxu0 0.0
    %820 = vmatprep.subr.mxu0 0.0
    %821 = vmatpush1.msra.mxu0 0.0
    %822 = vmatprep.subr.mxu0 0.0
    %823 = vmatpush1.msra.mxu0 0.0
    %824 = vmatprep.subr.mxu0 0.0
    %825 = vmatpush1.msra.mxu0 0.0
    %826 = vmatprep.subr.mxu0 0.0
    %827 = vmatpush1.msra.mxu0 0.0
    %828 = vmatprep.subr.mxu0 0.0
    %829 = vmatpush1.msra.mxu0 0.0
    %830 = vmatprep.subr.mxu0 0.0
    %831 = vmatpush1.msra.mxu0 0.0
    %832 = vmatprep.subr.mxu0 0.0
    %833 = vmatpush1.msra.mxu0 0.0
    %834 = vmatprep.subr.mxu0 0.0
    %835 = vmatpush1.msra.mxu0 0.0
    %836 = vmatprep.subr.mxu0 0.0
    %837 = vmatpush1.msra.mxu0 0.0
    %838 = vmatprep.subr.mxu0 0.0
    %839 = vmatpush1.msra.mxu0 0.0
    %840 = vmatprep.subr.mxu0 0.0
    %841 = vmatpush1.msra.mxu0 0.0
    %842 = vmatprep.subr.mxu0 0.0
    %843 = vmatpush1.msra.mxu0 0.0
    %844 = vmatprep.subr.mxu0 0.0
    %845 = vmatpush1.msra.mxu0 0.0
    %846 = vmatprep.mubr.f32.mxu0 0.0
    %847 = vmatmul.mubr.f32.gmra.mrb[0].mxu0 %v778
    %v848 = vpop.f32.mrb[0].mxu0
    %v849 = vadd.f32 0.0, %v848
    %v850 = vpop.f32.mrb[0].mxu0
    %851 = vmatprep.mubr.f32.mxu0 0.0
    %852 = vmatmul.mubr.f32.gmra.mrb[0].mxu0 %v780
    %v853 = vpop.f32.mrb[0].mxu0
    %v854 = vadd.f32 0.0, %v853
    %v855 = vpop.f32.mrb[0].mxu0
    %856 = vdwg.mxu0
    %857 = vmatprep.subr.mxu0 0.0
    %858 = vmatpush1.xpose.msra.mxu0 %v695
    %859 = vmatprep.subr.mxu0 0.0
    %860 = vmatpush1.xpose.msra.mxu0 %v697
    %861 = vmatprep.subr.mxu0 0.0
    %862 = vmatpush1.xpose.msra.mxu0 0.0
    %863 = vmatprep.subr.mxu0 0.0
    %864 = vmatpush1.xpose.msra.mxu0 0.0
    %865 = vmatprep.subr.mxu0 0.0
    %866 = vmatpush1.xpose.msra.mxu0 0.0
    %867 = vmatprep.subr.mxu0 0.0
    %868 = vmatpush1.xpose.msra.mxu0 0.0
    %869 = vmatprep.subr.mxu0 0.0
    %870 = vmatpush1.xpose.msra.mxu0 0.0
    %871 = vmatprep.subr.mxu0 0.0
    %872 = vmatpush1.xpose.msra.mxu0 0.0
    %873 = vmatprep.subr.mxu0 0.0
    %874 = vmatpush1.xpose.msra.mxu0 0.0
    %875 = vmatprep.subr.mxu0 0.0
    %876 = vmatpush1.xpose.msra.mxu0 0.0
    %877 = vmatprep.subr.mxu0 0.0
    %878 = vmatpush1.xpose.msra.mxu0 0.0
    %879 = vmatprep.subr.mxu0 0.0
    %880 = vmatpush1.xpose.msra.mxu0 0.0
    %881 = vmatprep.subr.mxu0 0.0
    %882 = vmatpush1.xpose.msra.mxu0 0.0
    %883 = vmatprep.subr.mxu0 0.0
    %884 = vmatpush1.xpose.msra.mxu0 0.0
    %885 = vmatprep.subr.mxu0 0.0
    %886 = vmatpush1.xpose.msra.mxu0 0.0
    %887 = vmatprep.subr.mxu0 0.0
    %888 = vmatpush1.xpose.msra.mxu0 0.0
    %889 = vmatprep.subr.mxu0 0.0
    %890 = vmatpush1.xpose.msra.mxu0 0.0
    %891 = vmatprep.subr.mxu0 0.0
    %892 = vmatpush1.xpose.msra.mxu0 0.0
    %893 = vmatprep.subr.mxu0 0.0
    %894 = vmatpush1.xpose.msra.mxu0 0.0
    %895 = vmatprep.subr.mxu0 0.0
    %896 = vmatpush1.xpose.msra.mxu0 0.0
    %897 = vmatprep.subr.mxu0 0.0
    %898 = vmatpush1.xpose.msra.mxu0 0.0
    %899 = vmatprep.subr.mxu0 0.0
    %900 = vmatpush1.xpose.msra.mxu0 0.0
    %901 = vmatprep.subr.mxu0 0.0
    %902 = vmatpush1.xpose.msra.mxu0 0.0
    %903 = vmatprep.subr.mxu0 0.0
    %904 = vmatpush1.xpose.msra.mxu0 0.0
    %905 = vmatprep.subr.mxu0 0.0
    %906 = vmatpush1.xpose.msra.mxu0 0.0
    %907 = vmatprep.subr.mxu0 0.0
    %908 = vmatpush1.xpose.msra.mxu0 0.0
    %909 = vmatprep.subr.mxu0 0.0
    %910 = vmatpush1.xpose.msra.mxu0 0.0
    %911 = vmatprep.subr.mxu0 0.0
    %912 = vmatpush1.xpose.msra.mxu0 0.0
    %913 = vmatprep.subr.mxu0 0.0
    %914 = vmatpush1.xpose.msra.mxu0 0.0
    %915 = vmatprep.subr.mxu0 0.0
    %916 = vmatpush1.xpose.msra.mxu0 0.0
    %917 = vmatprep.subr.mxu0 0.0
    %918 = vmatpush1.xpose.msra.mxu0 0.0
    %919 = vmatprep.subr.mxu0 0.0
    %920 = vmatpush1.xpose.msra.mxu0 0.0
    %921 = vmatprep.mubr.f32.mxu0 0.0
    %922 = vmatmul.mubr.f32.gmra.mrb[0].mxu0 %v778
    %v923 = vpop.f32.mrb[0].mxu0
    %v924 = vadd.f32 0.0, %v923
    %v925 = vpop.f32.mrb[0].mxu0
    %926 = vmatprep.mubr.f32.mxu0 0.0
    %927 = vmatmul.mubr.f32.gmra.mrb[0].mxu0 %v780
    %v928 = vpop.f32.mrb[0].mxu0
    %v929 = vadd.f32 0.0, %v928
    %v930 = vpop.f32.mrb[0].mxu0
    %931 = vdwg.mxu0
    %v932 = vmul.f32 %v924, %v457
    %v933 = vmul.f32 %v929, %v457
    %v934 = vmax.f32 %v932, -5.0
    %v935 = vmax.f32 %v933, -5.0
    %v936 = vmin.f32 %v934, 5.0
    %v937 = vmin.f32 %v935, 5.0
    %v938 = vmul.f32 %v936, 1.442695
    %v939 = vpow.pop %v938
    %v940 = vmul.f32 %v937, 1.442695
    %v941 = vpow.pop %v940
    %v942 = vmul.f32 %v939, %v32
    %v943 = vmul.f32 %v941, %v33
    %v944 = vsel %vm219, %v942, 0.0
    %945 = vadd.xlane.f32.xlu0 %v944
    %v946 = vpop.xlane.xlu0 %945
    %v947 = vsel %vm219, %v943, 0.0
    %948 = vadd.xlane.f32.xlu0 %v947
    %v949 = vpop.xlane.xlu0 %948
    %v950 = vrcp.pop %v946
    %v951 = vrcp.pop %v949
    %v953 = vsel %vm219, %v942, 0
    %v956 = vsel %vm219, %v943, 0
    %958 = vmatprep.subr.mxu0 0.0
    %959 = vmatpush1.msra.mxu0 %v766
    %960 = vmatprep.subr.mxu0 0.0
    %961 = vmatpush1.msra.mxu0 %v771
    %962 = vmatprep.subr.mxu0 0.0
    %963 = vmatpush1.msra.mxu0 0.0
    %964 = vmatprep.subr.mxu0 0.0
    %965 = vmatpush1.msra.mxu0 0.0
    %966 = vmatprep.subr.mxu0 0.0
    %967 = vmatpush1.msra.mxu0 0.0
    %968 = vmatprep.subr.mxu0 0.0
    %969 = vmatpush1.msra.mxu0 0.0
    %970 = vmatprep.subr.mxu0 0.0
    %971 = vmatpush1.msra.mxu0 0.0
    %972 = vmatprep.subr.mxu0 0.0
    %973 = vmatpush1.msra.mxu0 0.0
    %974 = vmatprep.subr.mxu0 0.0
    %975 = vmatpush1.msra.mxu0 0.0
    %976 = vmatprep.subr.mxu0 0.0
    %977 = vmatpush1.msra.mxu0 0.0
    %978 = vmatprep.subr.mxu0 0.0
    %979 = vmatpush1.msra.mxu0 0.0
    %980 = vmatprep.subr.mxu0 0.0
    %981 = vmatpush1.msra.mxu0 0.0
    %982 = vmatprep.subr.mxu0 0.0
    %983 = vmatpush1.msra.mxu0 0.0
    %984 = vmatprep.subr.mxu0 0.0
    %985 = vmatpush1.msra.mxu0 0.0
    %986 = vmatprep.subr.mxu0 0.0
    %987 = vmatpush1.msra.mxu0 0.0
    %988 = vmatprep.subr.mxu0 0.0
    %989 = vmatpush1.msra.mxu0 0.0
    %990 = vmatprep.subr.mxu0 0.0
    %991 = vmatpush1.msra.mxu0 0.0
    %992 = vmatprep.subr.mxu0 0.0
    %993 = vmatpush1.msra.mxu0 0.0
    %994 = vmatprep.subr.mxu0 0.0
    %995 = vmatpush1.msra.mxu0 0.0
    %996 = vmatprep.subr.mxu0 0.0
    %997 = vmatpush1.msra.mxu0 0.0
    %998 = vmatprep.subr.mxu0 0.0
    %999 = vmatpush1.msra.mxu0 0.0
    %1000 = vmatprep.subr.mxu0 0.0
    %1001 = vmatpush1.msra.mxu0 0.0
    %1002 = vmatprep.subr.mxu0 0.0
    %1003 = vmatpush1.msra.mxu0 0.0
    %1004 = vmatprep.subr.mxu0 0.0
    %1005 = vmatpush1.msra.mxu0 0.0
    %1006 = vmatprep.subr.mxu0 0.0
    %1007 = vmatpush1.msra.mxu0 0.0
    %1008 = vmatprep.subr.mxu0 0.0
    %1009 = vmatpush1.msra.mxu0 0.0
    %1010 = vmatprep.subr.mxu0 0.0
    %1011 = vmatpush1.msra.mxu0 0.0
    %1012 = vmatprep.subr.mxu0 0.0
    %1013 = vmatpush1.msra.mxu0 0.0
    %1014 = vmatprep.subr.mxu0 0.0
    %1015 = vmatpush1.msra.mxu0 0.0
    %1016 = vmatprep.subr.mxu0 0.0
    %1017 = vmatpush1.msra.mxu0 0.0
    %1018 = vmatprep.subr.mxu0 0.0
    %1019 = vmatpush1.msra.mxu0 0.0
    %1020 = vmatprep.subr.mxu0 0.0
    %1021 = vmatpush1.msra.mxu0 0.0
    %1022 = vmatprep.mubr.f32.mxu0 0.0
    %1023 = vmatmul.mubr.f32.gmra.mrb[0].mxu0 %v953
    %v1024 = vpop.f32.mrb[0].mxu0
    %v1025 = vadd.f32 0.0, %v1024
    %v1026 = vpop.f32.mrb[0].mxu0
    %1027 = vmatprep.mubr.f32.mxu0 0.0
    %1028 = vmatmul.mubr.f32.gmra.mrb[0].mxu0 %v956
    %v1029 = vpop.f32.mrb[0].mxu0
    %v1030 = vadd.f32 0.0, %v1029
    %v1031 = vpop.f32.mrb[0].mxu0
    %1032 = vdwg.mxu0
    %1033 = vxpose.xlu0.b32.start [1/16] %v939, 128
    %1034 = vxpose.xlu0.b32.cont [2/16] %v941, 128
    %1035 = vxpose.xlu0.b32.cont [3/16] 0.0, 128
    %1036 = vxpose.xlu0.b32.cont [4/16] 0.0, 128
    %1037 = vxpose.xlu0.b32.cont [5/16] 0.0, 128
    %1038 = vxpose.xlu0.b32.cont [6/16] 0.0, 128
    %1039 = vxpose.xlu0.b32.cont [7/16] 0.0, 128
    %1040 = vxpose.xlu0.b32.cont [8/16] 0.0, 128
    %1041 = vxpose.xlu0.b32.cont [9/16] 0.0, 128
    %1042 = vxpose.xlu0.b32.cont [10/16] 0.0, 128
    %1043 = vxpose.xlu0.b32.cont [11/16] 0.0, 128
    %1044 = vxpose.xlu0.b32.cont [12/16] 0.0, 128
    %1045 = vxpose.xlu0.b32.cont [13/16] 0.0, 128
    %1046 = vxpose.xlu0.b32.cont [14/16] 0.0, 128
    %1047 = vxpose.xlu0.b32.cont [15/16] 0.0, 128
    %1048 = vxpose.xlu0.b32.end [16/16] 0.0, 128
    %v1049 = vpop.trf.xlu0
    %v1050 = vpop.trf.xlu0
    %v1051 = vpop.trf.xlu0
    %v1052 = vpop.trf.xlu0
    %v1053 = vpop.trf.xlu0
    %v1054 = vpop.trf.xlu0
    %v1055 = vpop.trf.xlu0
    %v1056 = vpop.trf.xlu0
    %v1057 = vpop.trf.xlu0
    %v1058 = vpop.trf.xlu0
    %v1059 = vpop.trf.xlu0
    %v1060 = vpop.trf.xlu0
    %v1061 = vpop.trf.xlu0
    %v1062 = vpop.trf.xlu0
    %v1063 = vpop.trf.xlu0
    %v1064 = vpop.trf.xlu0
    %v1065 = vmul.f32 %v1049, %v32
    %v1066 = vmul.f32 %v1050, %v33
    %v1067 = vmul.f32 %v849, %v950
    %v1068 = vmul.f32 %v854, %v951
    %v1070 = vsel %vm219, %v1065, 0
    %v1073 = vsel %vm219, %v1066, 0
    %1075 = vmatprep.subr.mxu0 0.0
    %1076 = vmatpush1.msra.mxu0 %v1067
    %1077 = vmatprep.subr.mxu0 0.0
    %1078 = vmatpush1.msra.mxu0 %v1068
    %1079 = vmatprep.subr.mxu0 0.0
    %1080 = vmatpush1.msra.mxu0 0.0
    %1081 = vmatprep.subr.mxu0 0.0
    %1082 = vmatpush1.msra.mxu0 0.0
    %1083 = vmatprep.subr.mxu0 0.0
    %1084 = vmatpush1.msra.mxu0 0.0
    %1085 = vmatprep.subr.mxu0 0.0
    %1086 = vmatpush1.msra.mxu0 0.0
    %1087 = vmatprep.subr.mxu0 0.0
    %1088 = vmatpush1.msra.mxu0 0.0
    %1089 = vmatprep.subr.mxu0 0.0
    %1090 = vmatpush1.msra.mxu0 0.0
    %1091 = vmatprep.subr.mxu0 0.0
    %1092 = vmatpush1.msra.mxu0 0.0
    %1093 = vmatprep.subr.mxu0 0.0
    %1094 = vmatpush1.msra.mxu0 0.0
    %1095 = vmatprep.subr.mxu0 0.0
    %1096 = vmatpush1.msra.mxu0 0.0
    %1097 = vmatprep.subr.mxu0 0.0
    %1098 = vmatpush1.msra.mxu0 0.0
    %1099 = vmatprep.subr.mxu0 0.0
    %1100 = vmatpush1.msra.mxu0 0.0
    %1101 = vmatprep.subr.mxu0 0.0
    %1102 = vmatpush1.msra.mxu0 0.0
    %1103 = vmatprep.subr.mxu0 0.0
    %1104 = vmatpush1.msra.mxu0 0.0
    %1105 = vmatprep.subr.mxu0 0.0
    %1106 = vmatpush1.msra.mxu0 0.0
    %1107 = vmatprep.subr.mxu0 0.0
    %1108 = vmatpush1.msra.mxu0 0.0
    %1109 = vmatprep.subr.mxu0 0.0
    %1110 = vmatpush1.msra.mxu0 0.0
    %1111 = vmatprep.subr.mxu0 0.0
    %1112 = vmatpush1.msra.mxu0 0.0
    %1113 = vmatprep.subr.mxu0 0.0
    %1114 = vmatpush1.msra.mxu0 0.0
    %1115 = vmatprep.subr.mxu0 0.0
    %1116 = vmatpush1.msra.mxu0 0.0
    %1117 = vmatprep.subr.mxu0 0.0
    %1118 = vmatpush1.msra.mxu0 0.0
    %1119 = vmatprep.subr.mxu0 0.0
    %1120 = vmatpush1.msra.mxu0 0.0
    %1121 = vmatprep.subr.mxu0 0.0
    %1122 = vmatpush1.msra.mxu0 0.0
    %1123 = vmatprep.subr.mxu0 0.0
    %1124 = vmatpush1.msra.mxu0 0.0
    %1125 = vmatprep.subr.mxu0 0.0
    %1126 = vmatpush1.msra.mxu0 0.0
    %1127 = vmatprep.subr.mxu0 0.0
    %1128 = vmatpush1.msra.mxu0 0.0
    %1129 = vmatprep.subr.mxu0 0.0
    %1130 = vmatpush1.msra.mxu0 0.0
    %1131 = vmatprep.subr.mxu0 0.0
    %1132 = vmatpush1.msra.mxu0 0.0
    %1133 = vmatprep.subr.mxu0 0.0
    %1134 = vmatpush1.msra.mxu0 0.0
    %1135 = vmatprep.subr.mxu0 0.0
    %1136 = vmatpush1.msra.mxu0 0.0
    %1137 = vmatprep.subr.mxu0 0.0
    %1138 = vmatpush1.msra.mxu0 0.0
    %1139 = vmatprep.mubr.f32.mxu0 0.0
    %1140 = vmatmul.mubr.f32.gmra.mrb[0].mxu0 %v1070
    %v1141 = vpop.f32.mrb[0].mxu0
    %v1142 = vadd.f32 0.0, %v1141
    %v1143 = vpop.f32.mrb[0].mxu0
    %1144 = vmatprep.mubr.f32.mxu0 0.0
    %1145 = vmatmul.mubr.f32.gmra.mrb[0].mxu0 %v1073
    %v1146 = vpop.f32.mrb[0].mxu0
    %v1147 = vadd.f32 0.0, %v1146
    %v1148 = vpop.f32.mrb[0].mxu0
    %1149 = vdwg.mxu0
    %v1150 = vmul.f32 %v1025, %v950
    %v1151 = vmul.f32 %v1030, %v951
    %v1152 = vadd.f32 %v680, %v1150
    %v1153 = vadd.f32 %v681, %v1151
    %v1154 = vadd.f32 %v1152, %v1142
    %v1155 = vadd.f32 %v1153, %v1147
    %v1156 = vlog2.pop %v946
    %v1157 = vmul.f32 %v1156, 0.6931472
    %v1158 = vlog2.pop %v949
    %v1159 = vmul.f32 %v1158, 0.6931472
    %v1160 = vmul.f32 %v686, %v1157
    %v1161 = vmul.f32 %v686, %v1159
    %v1162 = vadd.f32 %v689, %v1160
    %v1163 = vadd.f32 %v690, %v1161
    %1164 = vrot.lane.b32.xlu0 %v195, 96
    %v1165 = vpop.permute.xlu0 %1164
    %1166 = vrot.lane.b32.xlu0 %v200, 96
    %v1167 = vpop.permute.xlu0 %1166
    %v1168 = vsel %vm219, %v1165, 0
    %v1170 = vsel %vm219, %v1167, 0
    %1172 = vmatprep.subr.mxu0 0.0
    %1173 = vmatpush1.msra.mxu0 %v207
    %1174 = vmatprep.subr.mxu0 0.0
    %1175 = vmatpush1.msra.mxu0 %v208
    %1176 = vmatprep.subr.mxu0 0.0
    %1177 = vmatpush1.msra.mxu0 0.0
    %1178 = vmatprep.subr.mxu0 0.0
    %1179 = vmatpush1.msra.mxu0 0.0
    %1180 = vmatprep.subr.mxu0 0.0
    %1181 = vmatpush1.msra.mxu0 0.0
    %1182 = vmatprep.subr.mxu0 0.0
    %1183 = vmatpush1.msra.mxu0 0.0
    %1184 = vmatprep.subr.mxu0 0.0
    %1185 = vmatpush1.msra.mxu0 0.0
    %1186 = vmatprep.subr.mxu0 0.0
    %1187 = vmatpush1.msra.mxu0 0.0
    %1188 = vmatprep.subr.mxu0 0.0
    %1189 = vmatpush1.msra.mxu0 0.0
    %1190 = vmatprep.subr.mxu0 0.0
    %1191 = vmatpush1.msra.mxu0 0.0
    %1192 = vmatprep.subr.mxu0 0.0
    %1193 = vmatpush1.msra.mxu0 0.0
    %1194 = vmatprep.subr.mxu0 0.0
    %1195 = vmatpush1.msra.mxu0 0.0
    %1196 = vmatprep.subr.mxu0 0.0
    %1197 = vmatpush1.msra.mxu0 0.0
    %1198 = vmatprep.subr.mxu0 0.0
    %1199 = vmatpush1.msra.mxu0 0.0
    %1200 = vmatprep.subr.mxu0 0.0
    %1201 = vmatpush1.msra.mxu0 0.0
    %1202 = vmatprep.subr.mxu0 0.0
    %1203 = vmatpush1.msra.mxu0 0.0
    %1204 = vmatprep.subr.mxu0 0.0
    %1205 = vmatpush1.msra.mxu0 0.0
    %1206 = vmatprep.subr.mxu0 0.0
    %1207 = vmatpush1.msra.mxu0 0.0
    %1208 = vmatprep.subr.mxu0 0.0
    %1209 = vmatpush1.msra.mxu0 0.0
    %1210 = vmatprep.subr.mxu0 0.0
    %1211 = vmatpush1.msra.mxu0 0.0
    %1212 = vmatprep.subr.mxu0 0.0
    %1213 = vmatpush1.msra.mxu0 0.0
    %1214 = vmatprep.subr.mxu0 0.0
    %1215 = vmatpush1.msra.mxu0 0.0
    %1216 = vmatprep.subr.mxu0 0.0
    %1217 = vmatpush1.msra.mxu0 0.0
    %1218 = vmatprep.subr.mxu0 0.0
    %1219 = vmatpush1.msra.mxu0 0.0
    %1220 = vmatprep.subr.mxu0 0.0
    %1221 = vmatpush1.msra.mxu0 0.0
    %1222 = vmatprep.subr.mxu0 0.0
    %1223 = vmatpush1.msra.mxu0 0.0
    %1224 = vmatprep.subr.mxu0 0.0
    %1225 = vmatpush1.msra.mxu0 0.0
    %1226 = vmatprep.subr.mxu0 0.0
    %1227 = vmatpush1.msra.mxu0 0.0
    %1228 = vmatprep.subr.mxu0 0.0
    %1229 = vmatpush1.msra.mxu0 0.0
    %1230 = vmatprep.subr.mxu0 0.0
    %1231 = vmatpush1.msra.mxu0 0.0
    %1232 = vmatprep.subr.mxu0 0.0
    %1233 = vmatpush1.msra.mxu0 0.0
    %1234 = vmatprep.subr.mxu0 0.0
    %1235 = vmatpush1.msra.mxu0 0.0
    %1236 = vmatprep.mubr.f32.mxu0 0.0
    %1237 = vmatmul.mubr.f32.gmra.mrb[0].mxu0 %v1168
    %v1238 = vpop.f32.mrb[0].mxu0
    %v1239 = vadd.f32 0.0, %v1238
    %v1240 = vpop.f32.mrb[0].mxu0
    %1241 = vmatprep.mubr.f32.mxu0 0.0
    %1242 = vmatmul.mubr.f32.gmra.mrb[0].mxu0 %v1170
    %v1243 = vpop.f32.mrb[0].mxu0
    %v1244 = vadd.f32 0.0, %v1243
    %v1245 = vpop.f32.mrb[0].mxu0
    %1246 = vdwg.mxu0
    %1247 = vrot.lane.b32.xlu0 %v116, 96
    %v1248 = vpop.permute.xlu0 %1247
    %1249 = vrot.lane.b32.xlu0 %v121, 96
    %v1250 = vpop.permute.xlu0 %1249
    %v1251 = vsel %vm219, %v1248, 0
    %v1253 = vsel %vm219, %v1250, 0
    %1255 = vmatprep.subr.mxu0 0.0
    %1256 = vmatpush1.msra.mxu0 %v215
    %1257 = vmatprep.subr.mxu0 0.0
    %1258 = vmatpush1.msra.mxu0 %v216
    %1259 = vmatprep.subr.mxu0 0.0
    %1260 = vmatpush1.msra.mxu0 0.0
    %1261 = vmatprep.subr.mxu0 0.0
    %1262 = vmatpush1.msra.mxu0 0.0
    %1263 = vmatprep.subr.mxu0 0.0
    %1264 = vmatpush1.msra.mxu0 0.0
    %1265 = vmatprep.subr.mxu0 0.0
    %1266 = vmatpush1.msra.mxu0 0.0
    %1267 = vmatprep.subr.mxu0 0.0
    %1268 = vmatpush1.msra.mxu0 0.0
    %1269 = vmatprep.subr.mxu0 0.0
    %1270 = vmatpush1.msra.mxu0 0.0
    %1271 = vmatprep.subr.mxu0 0.0
    %1272 = vmatpush1.msra.mxu0 0.0
    %1273 = vmatprep.subr.mxu0 0.0
    %1274 = vmatpush1.msra.mxu0 0.0
    %1275 = vmatprep.subr.mxu0 0.0
    %1276 = vmatpush1.msra.mxu0 0.0
    %1277 = vmatprep.subr.mxu0 0.0
    %1278 = vmatpush1.msra.mxu0 0.0
    %1279 = vmatprep.subr.mxu0 0.0
    %1280 = vmatpush1.msra.mxu0 0.0
    %1281 = vmatprep.subr.mxu0 0.0
    %1282 = vmatpush1.msra.mxu0 0.0
    %1283 = vmatprep.subr.mxu0 0.0
    %1284 = vmatpush1.msra.mxu0 0.0
    %1285 = vmatprep.subr.mxu0 0.0
    %1286 = vmatpush1.msra.mxu0 0.0
    %1287 = vmatprep.subr.mxu0 0.0
    %1288 = vmatpush1.msra.mxu0 0.0
    %1289 = vmatprep.subr.mxu0 0.0
    %1290 = vmatpush1.msra.mxu0 0.0
    %1291 = vmatprep.subr.mxu0 0.0
    %1292 = vmatpush1.msra.mxu0 0.0
    %1293 = vmatprep.subr.mxu0 0.0
    %1294 = vmatpush1.msra.mxu0 0.0
    %1295 = vmatprep.subr.mxu0 0.0
    %1296 = vmatpush1.msra.mxu0 0.0
    %1297 = vmatprep.subr.mxu0 0.0
    %1298 = vmatpush1.msra.mxu0 0.0
    %1299 = vmatprep.subr.mxu0 0.0
    %1300 = vmatpush1.msra.mxu0 0.0
    %1301 = vmatprep.subr.mxu0 0.0
    %1302 = vmatpush1.msra.mxu0 0.0
    %1303 = vmatprep.subr.mxu0 0.0
    %1304 = vmatpush1.msra.mxu0 0.0
    %1305 = vmatprep.subr.mxu0 0.0
    %1306 = vmatpush1.msra.mxu0 0.0
    %1307 = vmatprep.subr.mxu0 0.0
    %1308 = vmatpush1.msra.mxu0 0.0
    %1309 = vmatprep.subr.mxu0 0.0
    %1310 = vmatpush1.msra.mxu0 0.0
    %1311 = vmatprep.subr.mxu0 0.0
    %1312 = vmatpush1.msra.mxu0 0.0
    %1313 = vmatprep.subr.mxu0 0.0
    %1314 = vmatpush1.msra.mxu0 0.0
    %1315 = vmatprep.subr.mxu0 0.0
    %1316 = vmatpush1.msra.mxu0 0.0
    %1317 = vmatprep.subr.mxu0 0.0
    %1318 = vmatpush1.msra.mxu0 0.0
    %1319 = vmatprep.mubr.f32.mxu0 0.0
    %1320 = vmatmul.mubr.f32.gmra.mrb[0].mxu0 %v1251
    %v1321 = vpop.f32.mrb[0].mxu0
    %v1322 = vadd.f32 0.0, %v1321
    %v1323 = vpop.f32.mrb[0].mxu0
    %1324 = vmatprep.mubr.f32.mxu0 0.0
    %1325 = vmatmul.mubr.f32.gmra.mrb[0].mxu0 %v1253
    %v1326 = vpop.f32.mrb[0].mxu0
    %v1327 = vadd.f32 0.0, %v1326
    %v1328 = vpop.f32.mrb[0].mxu0
    %1329 = vdwg.mxu0
    %1330 = vmatprep.subr.mxu0 0.0
    %1331 = vmatpush1.xpose.msra.mxu0 %v1168
    %1332 = vmatprep.subr.mxu0 0.0
    %1333 = vmatpush1.xpose.msra.mxu0 %v1170
    %1334 = vmatprep.subr.mxu0 0.0
    %1335 = vmatpush1.xpose.msra.mxu0 0.0
    %1336 = vmatprep.subr.mxu0 0.0
    %1337 = vmatpush1.xpose.msra.mxu0 0.0
    %1338 = vmatprep.subr.mxu0 0.0
    %1339 = vmatpush1.xpose.msra.mxu0 0.0
    %1340 = vmatprep.subr.mxu0 0.0
    %1341 = vmatpush1.xpose.msra.mxu0 0.0
    %1342 = vmatprep.subr.mxu0 0.0
    %1343 = vmatpush1.xpose.msra.mxu0 0.0
    %1344 = vmatprep.subr.mxu0 0.0
    %1345 = vmatpush1.xpose.msra.mxu0 0.0
    %1346 = vmatprep.subr.mxu0 0.0
    %1347 = vmatpush1.xpose.msra.mxu0 0.0
    %1348 = vmatprep.subr.mxu0 0.0
    %1349 = vmatpush1.xpose.msra.mxu0 0.0
    %1350 = vmatprep.subr.mxu0 0.0
    %1351 = vmatpush1.xpose.msra.mxu0 0.0
    %1352 = vmatprep.subr.mxu0 0.0
    %1353 = vmatpush1.xpose.msra.mxu0 0.0
    %1354 = vmatprep.subr.mxu0 0.0
    %1355 = vmatpush1.xpose.msra.mxu0 0.0
    %1356 = vmatprep.subr.mxu0 0.0
    %1357 = vmatpush1.xpose.msra.mxu0 0.0
    %1358 = vmatprep.subr.mxu0 0.0
    %1359 = vmatpush1.xpose.msra.mxu0 0.0
    %1360 = vmatprep.subr.mxu0 0.0
    %1361 = vmatpush1.xpose.msra.mxu0 0.0
    %1362 = vmatprep.subr.mxu0 0.0
    %1363 = vmatpush1.xpose.msra.mxu0 0.0
    %1364 = vmatprep.subr.mxu0 0.0
    %1365 = vmatpush1.xpose.msra.mxu0 0.0
    %1366 = vmatprep.subr.mxu0 0.0
    %1367 = vmatpush1.xpose.msra.mxu0 0.0
    %1368 = vmatprep.subr.mxu0 0.0
    %1369 = vmatpush1.xpose.msra.mxu0 0.0
    %1370 = vmatprep.subr.mxu0 0.0
    %1371 = vmatpush1.xpose.msra.mxu0 0.0
    %1372 = vmatprep.subr.mxu0 0.0
    %1373 = vmatpush1.xpose.msra.mxu0 0.0
    %1374 = vmatprep.subr.mxu0 0.0
    %1375 = vmatpush1.xpose.msra.mxu0 0.0
    %1376 = vmatprep.subr.mxu0 0.0
    %1377 = vmatpush1.xpose.msra.mxu0 0.0
    %1378 = vmatprep.subr.mxu0 0.0
    %1379 = vmatpush1.xpose.msra.mxu0 0.0
    %1380 = vmatprep.subr.mxu0 0.0
    %1381 = vmatpush1.xpose.msra.mxu0 0.0
    %1382 = vmatprep.subr.mxu0 0.0
    %1383 = vmatpush1.xpose.msra.mxu0 0.0
    %1384 = vmatprep.subr.mxu0 0.0
    %1385 = vmatpush1.xpose.msra.mxu0 0.0
    %1386 = vmatprep.subr.mxu0 0.0
    %1387 = vmatpush1.xpose.msra.mxu0 0.0
    %1388 = vmatprep.subr.mxu0 0.0
    %1389 = vmatpush1.xpose.msra.mxu0 0.0
    %1390 = vmatprep.subr.mxu0 0.0
    %1391 = vmatpush1.xpose.msra.mxu0 0.0
    %1392 = vmatprep.subr.mxu0 0.0
    %1393 = vmatpush1.xpose.msra.mxu0 0.0
    %1394 = vmatprep.mubr.f32.mxu0 0.0
    %1395 = vmatmul.mubr.f32.gmra.mrb[0].mxu0 %v1251
    %v1396 = vpop.f32.mrb[0].mxu0
    %v1397 = vadd.f32 0.0, %v1396
    %v1398 = vpop.f32.mrb[0].mxu0
    %1399 = vmatprep.mubr.f32.mxu0 0.0
    %1400 = vmatmul.mubr.f32.gmra.mrb[0].mxu0 %v1253
    %v1401 = vpop.f32.mrb[0].mxu0
    %v1402 = vadd.f32 0.0, %v1401
    %v1403 = vpop.f32.mrb[0].mxu0
    %1404 = vdwg.mxu0
    %v1405 = vmul.f32 %v1397, %v457
    %v1406 = vmul.f32 %v1402, %v457
    %v1407 = vmax.f32 %v1405, -5.0
    %v1408 = vmax.f32 %v1406, -5.0
    %v1409 = vmin.f32 %v1407, 5.0
    %v1410 = vmin.f32 %v1408, 5.0
    %v1411 = vmul.f32 %v1409, 1.442695
    %v1412 = vpow.pop %v1411
    %v1413 = vmul.f32 %v1410, 1.442695
    %v1414 = vpow.pop %v1413
    %v1415 = vmul.f32 %v1412, %v32
    %v1416 = vmul.f32 %v1414, %v33
    %v1417 = vsel %vm219, %v1415, 0.0
    %1418 = vadd.xlane.f32.xlu0 %v1417
    %v1419 = vpop.xlane.xlu0 %1418
    %v1420 = vsel %vm219, %v1416, 0.0
    %1421 = vadd.xlane.f32.xlu0 %v1420
    %v1422 = vpop.xlane.xlu0 %1421
    %v1423 = vrcp.pop %v1419
    %v1424 = vrcp.pop %v1422
    %v1426 = vsel %vm219, %v1415, 0
    %v1429 = vsel %vm219, %v1416, 0
    %1431 = vmatprep.subr.mxu0 0.0
    %1432 = vmatpush1.msra.mxu0 %v1239
    %1433 = vmatprep.subr.mxu0 0.0
    %1434 = vmatpush1.msra.mxu0 %v1244
    %1435 = vmatprep.subr.mxu0 0.0
    %1436 = vmatpush1.msra.mxu0 0.0
    %1437 = vmatprep.subr.mxu0 0.0
    %1438 = vmatpush1.msra.mxu0 0.0
    %1439 = vmatprep.subr.mxu0 0.0
    %1440 = vmatpush1.msra.mxu0 0.0
    %1441 = vmatprep.subr.mxu0 0.0
    %1442 = vmatpush1.msra.mxu0 0.0
    %1443 = vmatprep.subr.mxu0 0.0
    %1444 = vmatpush1.msra.mxu0 0.0
    %1445 = vmatprep.subr.mxu0 0.0
    %1446 = vmatpush1.msra.mxu0 0.0
    %1447 = vmatprep.subr.mxu0 0.0
    %1448 = vmatpush1.msra.mxu0 0.0
    %1449 = vmatprep.subr.mxu0 0.0
    %1450 = vmatpush1.msra.mxu0 0.0
    %1451 = vmatprep.subr.mxu0 0.0
    %1452 = vmatpush1.msra.mxu0 0.0
    %1453 = vmatprep.subr.mxu0 0.0
    %1454 = vmatpush1.msra.mxu0 0.0
    %1455 = vmatprep.subr.mxu0 0.0
    %1456 = vmatpush1.msra.mxu0 0.0
    %1457 = vmatprep.subr.mxu0 0.0
    %1458 = vmatpush1.msra.mxu0 0.0
    %1459 = vmatprep.subr.mxu0 0.0
    %1460 = vmatpush1.msra.mxu0 0.0
    %1461 = vmatprep.subr.mxu0 0.0
    %1462 = vmatpush1.msra.mxu0 0.0
    %1463 = vmatprep.subr.mxu0 0.0
    %1464 = vmatpush1.msra.mxu0 0.0
    %1465 = vmatprep.subr.mxu0 0.0
    %1466 = vmatpush1.msra.mxu0 0.0
    %1467 = vmatprep.subr.mxu0 0.0
    %1468 = vmatpush1.msra.mxu0 0.0
    %1469 = vmatprep.subr.mxu0 0.0
    %1470 = vmatpush1.msra.mxu0 0.0
    %1471 = vmatprep.subr.mxu0 0.0
    %1472 = vmatpush1.msra.mxu0 0.0
    %1473 = vmatprep.subr.mxu0 0.0
    %1474 = vmatpush1.msra.mxu0 0.0
    %1475 = vmatprep.subr.mxu0 0.0
    %1476 = vmatpush1.msra.mxu0 0.0
    %1477 = vmatprep.subr.mxu0 0.0
    %1478 = vmatpush1.msra.mxu0 0.0
    %1479 = vmatprep.subr.mxu0 0.0
    %1480 = vmatpush1.msra.mxu0 0.0
    %1481 = vmatprep.subr.mxu0 0.0
    %1482 = vmatpush1.msra.mxu0 0.0
    %1483 = vmatprep.subr.mxu0 0.0
    %1484 = vmatpush1.msra.mxu0 0.0
    %1485 = vmatprep.subr.mxu0 0.0
    %1486 = vmatpush1.msra.mxu0 0.0
    %1487 = vmatprep.subr.mxu0 0.0
    %1488 = vmatpush1.msra.mxu0 0.0
    %1489 = vmatprep.subr.mxu0 0.0
    %1490 = vmatpush1.msra.mxu0 0.0
    %1491 = vmatprep.subr.mxu0 0.0
    %1492 = vmatpush1.msra.mxu0 0.0
    %1493 = vmatprep.subr.mxu0 0.0
    %1494 = vmatpush1.msra.mxu0 0.0
    %1495 = vmatprep.mubr.f32.mxu0 0.0
    %1496 = vmatmul.mubr.f32.gmra.mrb[0].mxu0 %v1426
    %v1497 = vpop.f32.mrb[0].mxu0
    %v1498 = vadd.f32 0.0, %v1497
    %v1499 = vpop.f32.mrb[0].mxu0
    %1500 = vmatprep.mubr.f32.mxu0 0.0
    %1501 = vmatmul.mubr.f32.gmra.mrb[0].mxu0 %v1429
    %v1502 = vpop.f32.mrb[0].mxu0
    %v1503 = vadd.f32 0.0, %v1502
    %v1504 = vpop.f32.mrb[0].mxu0
    %1505 = vdwg.mxu0
    %1506 = vxpose.xlu0.b32.start [1/16] %v1412, 128
    %1507 = vxpose.xlu0.b32.cont [2/16] %v1414, 128
    %1508 = vxpose.xlu0.b32.cont [3/16] 0.0, 128
    %1509 = vxpose.xlu0.b32.cont [4/16] 0.0, 128
    %1510 = vxpose.xlu0.b32.cont [5/16] 0.0, 128
    %1511 = vxpose.xlu0.b32.cont [6/16] 0.0, 128
    %1512 = vxpose.xlu0.b32.cont [7/16] 0.0, 128
    %1513 = vxpose.xlu0.b32.cont [8/16] 0.0, 128
    %1514 = vxpose.xlu0.b32.cont [9/16] 0.0, 128
    %1515 = vxpose.xlu0.b32.cont [10/16] 0.0, 128
    %1516 = vxpose.xlu0.b32.cont [11/16] 0.0, 128
    %1517 = vxpose.xlu0.b32.cont [12/16] 0.0, 128
    %1518 = vxpose.xlu0.b32.cont [13/16] 0.0, 128
    %1519 = vxpose.xlu0.b32.cont [14/16] 0.0, 128
    %1520 = vxpose.xlu0.b32.cont [15/16] 0.0, 128
    %1521 = vxpose.xlu0.b32.end [16/16] 0.0, 128
    %v1522 = vpop.trf.xlu0
    %v1523 = vpop.trf.xlu0
    %v1524 = vpop.trf.xlu0
    %v1525 = vpop.trf.xlu0
    %v1526 = vpop.trf.xlu0
    %v1527 = vpop.trf.xlu0
    %v1528 = vpop.trf.xlu0
    %v1529 = vpop.trf.xlu0
    %v1530 = vpop.trf.xlu0
    %v1531 = vpop.trf.xlu0
    %v1532 = vpop.trf.xlu0
    %v1533 = vpop.trf.xlu0
    %v1534 = vpop.trf.xlu0
    %v1535 = vpop.trf.xlu0
    %v1536 = vpop.trf.xlu0
    %v1537 = vpop.trf.xlu0
    %v1538 = vmul.f32 %v1522, %v32
    %v1539 = vmul.f32 %v1523, %v33
    %v1540 = vmul.f32 %v1322, %v1423
    %v1541 = vmul.f32 %v1327, %v1424
    %v1543 = vsel %vm219, %v1538, 0
    %v1546 = vsel %vm219, %v1539, 0
    %1548 = vmatprep.subr.mxu0 0.0
    %1549 = vmatpush1.msra.mxu0 %v1540
    %1550 = vmatprep.subr.mxu0 0.0
    %1551 = vmatpush1.msra.mxu0 %v1541
    %1552 = vmatprep.subr.mxu0 0.0
    %1553 = vmatpush1.msra.mxu0 0.0
    %1554 = vmatprep.subr.mxu0 0.0
    %1555 = vmatpush1.msra.mxu0 0.0
    %1556 = vmatprep.subr.mxu0 0.0
    %1557 = vmatpush1.msra.mxu0 0.0
    %1558 = vmatprep.subr.mxu0 0.0
    %1559 = vmatpush1.msra.mxu0 0.0
    %1560 = vmatprep.subr.mxu0 0.0
    %1561 = vmatpush1.msra.mxu0 0.0
    %1562 = vmatprep.subr.mxu0 0.0
    %1563 = vmatpush1.msra.mxu0 0.0
    %1564 = vmatprep.subr.mxu0 0.0
    %1565 = vmatpush1.msra.mxu0 0.0
    %1566 = vmatprep.subr.mxu0 0.0
    %1567 = vmatpush1.msra.mxu0 0.0
    %1568 = vmatprep.subr.mxu0 0.0
    %1569 = vmatpush1.msra.mxu0 0.0
    %1570 = vmatprep.subr.mxu0 0.0
    %1571 = vmatpush1.msra.mxu0 0.0
    %1572 = vmatprep.subr.mxu0 0.0
    %1573 = vmatpush1.msra.mxu0 0.0
    %1574 = vmatprep.subr.mxu0 0.0
    %1575 = vmatpush1.msra.mxu0 0.0
    %1576 = vmatprep.subr.mxu0 0.0
    %1577 = vmatpush1.msra.mxu0 0.0
    %1578 = vmatprep.subr.mxu0 0.0
    %1579 = vmatpush1.msra.mxu0 0.0
    %1580 = vmatprep.subr.mxu0 0.0
    %1581 = vmatpush1.msra.mxu0 0.0
    %1582 = vmatprep.subr.mxu0 0.0
    %1583 = vmatpush1.msra.mxu0 0.0
    %1584 = vmatprep.subr.mxu0 0.0
    %1585 = vmatpush1.msra.mxu0 0.0
    %1586 = vmatprep.subr.mxu0 0.0
    %1587 = vmatpush1.msra.mxu0 0.0
    %1588 = vmatprep.subr.mxu0 0.0
    %1589 = vmatpush1.msra.mxu0 0.0
    %1590 = vmatprep.subr.mxu0 0.0
    %1591 = vmatpush1.msra.mxu0 0.0
    %1592 = vmatprep.subr.mxu0 0.0
    %1593 = vmatpush1.msra.mxu0 0.0
    %1594 = vmatprep.subr.mxu0 0.0
    %1595 = vmatpush1.msra.mxu0 0.0
    %1596 = vmatprep.subr.mxu0 0.0
    %1597 = vmatpush1.msra.mxu0 0.0
    %1598 = vmatprep.subr.mxu0 0.0
    %1599 = vmatpush1.msra.mxu0 0.0
    %1600 = vmatprep.subr.mxu0 0.0
    %1601 = vmatpush1.msra.mxu0 0.0
    %1602 = vmatprep.subr.mxu0 0.0
    %1603 = vmatpush1.msra.mxu0 0.0
    %1604 = vmatprep.subr.mxu0 0.0
    %1605 = vmatpush1.msra.mxu0 0.0
    %1606 = vmatprep.subr.mxu0 0.0
    %1607 = vmatpush1.msra.mxu0 0.0
    %1608 = vmatprep.subr.mxu0 0.0
    %1609 = vmatpush1.msra.mxu0 0.0
    %1610 = vmatprep.subr.mxu0 0.0
    %1611 = vmatpush1.msra.mxu0 0.0
    %1612 = vmatprep.mubr.f32.mxu0 0.0
    %1613 = vmatmul.mubr.f32.gmra.mrb[0].mxu0 %v1543
    %v1614 = vpop.f32.mrb[0].mxu0
    %v1615 = vadd.f32 0.0, %v1614
    %v1616 = vpop.f32.mrb[0].mxu0
    %1617 = vmatprep.mubr.f32.mxu0 0.0
    %1618 = vmatmul.mubr.f32.gmra.mrb[0].mxu0 %v1546
    %v1619 = vpop.f32.mrb[0].mxu0
    %v1620 = vadd.f32 0.0, %v1619
    %v1621 = vpop.f32.mrb[0].mxu0
    %1622 = vdwg.mxu0
    %v1623 = vmul.f32 %v1498, %v1423
    %v1624 = vmul.f32 %v1503, %v1424
    %v1625 = vadd.f32 %v1154, %v1623
    %v1626 = vadd.f32 %v1155, %v1624
    %v1627 = vadd.f32 %v1625, %v1615
    %v1628 = vadd.f32 %v1626, %v1620
    %v1629 = vlog2.pop %v1419
    %v1630 = vmul.f32 %v1629, 0.6931472
    %v1631 = vlog2.pop %v1422
    %v1632 = vmul.f32 %v1631, 0.6931472
    %v1633 = vmul.f32 %v686, %v1630
    %v1634 = vmul.f32 %v686, %v1632
    %v1635 = vadd.f32 %v1162, %v1633
    %v1636 = vadd.f32 %v1163, %v1634
    %1637 = vrot.lane.b32.xlu0 %v195, 80
    %v1638 = vpop.permute.xlu0 %1637
    %1639 = vrot.lane.b32.xlu0 %v200, 80
    %v1640 = vpop.permute.xlu0 %1639
    %v1641 = vsel %vm219, %v1638, 0
    %v1643 = vsel %vm219, %v1640, 0
    %1645 = vmatprep.subr.mxu0 0.0
    %1646 = vmatpush1.msra.mxu0 %v209
    %1647 = vmatprep.subr.mxu0 0.0
    %1648 = vmatpush1.msra.mxu0 %v210
    %1649 = vmatprep.subr.mxu0 0.0
    %1650 = vmatpush1.msra.mxu0 0.0
    %1651 = vmatprep.subr.mxu0 0.0
    %1652 = vmatpush1.msra.mxu0 0.0
    %1653 = vmatprep.subr.mxu0 0.0
    %1654 = vmatpush1.msra.mxu0 0.0
    %1655 = vmatprep.subr.mxu0 0.0
    %1656 = vmatpush1.msra.mxu0 0.0
    %1657 = vmatprep.subr.mxu0 0.0
    %1658 = vmatpush1.msra.mxu0 0.0
    %1659 = vmatprep.subr.mxu0 0.0
    %1660 = vmatpush1.msra.mxu0 0.0
    %1661 = vmatprep.subr.mxu0 0.0
    %1662 = vmatpush1.msra.mxu0 0.0
    %1663 = vmatprep.subr.mxu0 0.0
    %1664 = vmatpush1.msra.mxu0 0.0
    %1665 = vmatprep.subr.mxu0 0.0
    %1666 = vmatpush1.msra.mxu0 0.0
    %1667 = vmatprep.subr.mxu0 0.0
    %1668 = vmatpush1.msra.mxu0 0.0
    %1669 = vmatprep.subr.mxu0 0.0
    %1670 = vmatpush1.msra.mxu0 0.0
    %1671 = vmatprep.subr.mxu0 0.0
    %1672 = vmatpush1.msra.mxu0 0.0
    %1673 = vmatprep.subr.mxu0 0.0
    %1674 = vmatpush1.msra.mxu0 0.0
    %1675 = vmatprep.subr.mxu0 0.0
    %1676 = vmatpush1.msra.mxu0 0.0
    %1677 = vmatprep.subr.mxu0 0.0
    %1678 = vmatpush1.msra.mxu0 0.0
    %1679 = vmatprep.subr.mxu0 0.0
    %1680 = vmatpush1.msra.mxu0 0.0
    %1681 = vmatprep.subr.mxu0 0.0
    %1682 = vmatpush1.msra.mxu0 0.0
    %1683 = vmatprep.subr.mxu0 0.0
    %1684 = vmatpush1.msra.mxu0 0.0
    %1685 = vmatprep.subr.mxu0 0.0
    %1686 = vmatpush1.msra.mxu0 0.0
    %1687 = vmatprep.subr.mxu0 0.0
    %1688 = vmatpush1.msra.mxu0 0.0
    %1689 = vmatprep.subr.mxu0 0.0
    %1690 = vmatpush1.msra.mxu0 0.0
    %1691 = vmatprep.subr.mxu0 0.0
    %1692 = vmatpush1.msra.mxu0 0.0
    %1693 = vmatprep.subr.mxu0 0.0
    %1694 = vmatpush1.msra.mxu0 0.0
    %1695 = vmatprep.subr.mxu0 0.0
    %1696 = vmatpush1.msra.mxu0 0.0
    %1697 = vmatprep.subr.mxu0 0.0
    %1698 = vmatpush1.msra.mxu0 0.0
    %1699 = vmatprep.subr.mxu0 0.0
    %1700 = vmatpush1.msra.mxu0 0.0
    %1701 = vmatprep.subr.mxu0 0.0
    %1702 = vmatpush1.msra.mxu0 0.0
    %1703 = vmatprep.subr.mxu0 0.0
    %1704 = vmatpush1.msra.mxu0 0.0
    %1705 = vmatprep.subr.mxu0 0.0
    %1706 = vmatpush1.msra.mxu0 0.0
    %1707 = vmatprep.subr.mxu0 0.0
    %1708 = vmatpush1.msra.mxu0 0.0
    %1709 = vmatprep.mubr.f32.mxu0 0.0
    %1710 = vmatmul.mubr.f32.gmra.mrb[0].mxu0 %v1641
    %v1711 = vpop.f32.mrb[0].mxu0
    %v1712 = vadd.f32 0.0, %v1711
    %v1713 = vpop.f32.mrb[0].mxu0
    %1714 = vmatprep.mubr.f32.mxu0 0.0
    %1715 = vmatmul.mubr.f32.gmra.mrb[0].mxu0 %v1643
    %v1716 = vpop.f32.mrb[0].mxu0
    %v1717 = vadd.f32 0.0, %v1716
    %v1718 = vpop.f32.mrb[0].mxu0
    %1719 = vdwg.mxu0
    %1720 = vrot.lane.b32.xlu0 %v116, 80
    %v1721 = vpop.permute.xlu0 %1720
    %1722 = vrot.lane.b32.xlu0 %v121, 80
    %v1723 = vpop.permute.xlu0 %1722
    %v1724 = vsel %vm219, %v1721, 0
    %v1726 = vsel %vm219, %v1723, 0
    %1728 = vmatprep.subr.mxu0 0.0
    %1729 = vmatpush1.msra.mxu0 %v217
    %1730 = vmatprep.subr.mxu0 0.0
    %1731 = vmatpush1.msra.mxu0 %v218
    %1732 = vmatprep.subr.mxu0 0.0
    %1733 = vmatpush1.msra.mxu0 0.0
    %1734 = vmatprep.subr.mxu0 0.0
    %1735 = vmatpush1.msra.mxu0 0.0
    %1736 = vmatprep.subr.mxu0 0.0
    %1737 = vmatpush1.msra.mxu0 0.0
    %1738 = vmatprep.subr.mxu0 0.0
    %1739 = vmatpush1.msra.mxu0 0.0
    %1740 = vmatprep.subr.mxu0 0.0
    %1741 = vmatpush1.msra.mxu0 0.0
    %1742 = vmatprep.subr.mxu0 0.0
    %1743 = vmatpush1.msra.mxu0 0.0
    %1744 = vmatprep.subr.mxu0 0.0
    %1745 = vmatpush1.msra.mxu0 0.0
    %1746 = vmatprep.subr.mxu0 0.0
    %1747 = vmatpush1.msra.mxu0 0.0
    %1748 = vmatprep.subr.mxu0 0.0
    %1749 = vmatpush1.msra.mxu0 0.0
    %1750 = vmatprep.subr.mxu0 0.0
    %1751 = vmatpush1.msra.mxu0 0.0
    %1752 = vmatprep.subr.mxu0 0.0
    %1753 = vmatpush1.msra.mxu0 0.0
    %1754 = vmatprep.subr.mxu0 0.0
    %1755 = vmatpush1.msra.mxu0 0.0
    %1756 = vmatprep.subr.mxu0 0.0
    %1757 = vmatpush1.msra.mxu0 0.0
    %1758 = vmatprep.subr.mxu0 0.0
    %1759 = vmatpush1.msra.mxu0 0.0
    %1760 = vmatprep.subr.mxu0 0.0
    %1761 = vmatpush1.msra.mxu0 0.0
    %1762 = vmatprep.subr.mxu0 0.0
    %1763 = vmatpush1.msra.mxu0 0.0
    %1764 = vmatprep.subr.mxu0 0.0
    %1765 = vmatpush1.msra.mxu0 0.0
    %1766 = vmatprep.subr.mxu0 0.0
    %1767 = vmatpush1.msra.mxu0 0.0
    %1768 = vmatprep.subr.mxu0 0.0
    %1769 = vmatpush1.msra.mxu0 0.0
    %1770 = vmatprep.subr.mxu0 0.0
    %1771 = vmatpush1.msra.mxu0 0.0
    %1772 = vmatprep.subr.mxu0 0.0
    %1773 = vmatpush1.msra.mxu0 0.0
    %1774 = vmatprep.subr.mxu0 0.0
    %1775 = vmatpush1.msra.mxu0 0.0
    %1776 = vmatprep.subr.mxu0 0.0
    %1777 = vmatpush1.msra.mxu0 0.0
    %1778 = vmatprep.subr.mxu0 0.0
    %1779 = vmatpush1.msra.mxu0 0.0
    %1780 = vmatprep.subr.mxu0 0.0
    %1781 = vmatpush1.msra.mxu0 0.0
    %1782 = vmatprep.subr.mxu0 0.0
    %1783 = vmatpush1.msra.mxu0 0.0
    %1784 = vmatprep.subr.mxu0 0.0
    %1785 = vmatpush1.msra.mxu0 0.0
    %1786 = vmatprep.subr.mxu0 0.0
    %1787 = vmatpush1.msra.mxu0 0.0
    %1788 = vmatprep.subr.mxu0 0.0
    %1789 = vmatpush1.msra.mxu0 0.0
    %1790 = vmatprep.subr.mxu0 0.0
    %1791 = vmatpush1.msra.mxu0 0.0
    %1792 = vmatprep.mubr.f32.mxu0 0.0
    %1793 = vmatmul.mubr.f32.gmra.mrb[0].mxu0 %v1724
    %v1794 = vpop.f32.mrb[0].mxu0
    %v1795 = vadd.f32 0.0, %v1794
    %v1796 = vpop.f32.mrb[0].mxu0
    %1797 = vmatprep.mubr.f32.mxu0 0.0
    %1798 = vmatmul.mubr.f32.gmra.mrb[0].mxu0 %v1726
    %v1799 = vpop.f32.mrb[0].mxu0
    %v1800 = vadd.f32 0.0, %v1799
    %v1801 = vpop.f32.mrb[0].mxu0
    %1802 = vdwg.mxu0
    %1803 = vmatprep.subr.mxu0 0.0
    %1804 = vmatpush1.xpose.msra.mxu0 %v1641
    %1805 = vmatprep.subr.mxu0 0.0
    %1806 = vmatpush1.xpose.msra.mxu0 %v1643
    %1807 = vmatprep.subr.mxu0 0.0
    %1808 = vmatpush1.xpose.msra.mxu0 0.0
    %1809 = vmatprep.subr.mxu0 0.0
    %1810 = vmatpush1.xpose.msra.mxu0 0.0
    %1811 = vmatprep.subr.mxu0 0.0
    %1812 = vmatpush1.xpose.msra.mxu0 0.0
    %1813 = vmatprep.subr.mxu0 0.0
    %1814 = vmatpush1.xpose.msra.mxu0 0.0
    %1815 = vmatprep.subr.mxu0 0.0
    %1816 = vmatpush1.xpose.msra.mxu0 0.0
    %1817 = vmatprep.subr.mxu0 0.0
    %1818 = vmatpush1.xpose.msra.mxu0 0.0
    %1819 = vmatprep.subr.mxu0 0.0
    %1820 = vmatpush1.xpose.msra.mxu0 0.0
    %1821 = vmatprep.subr.mxu0 0.0
    %1822 = vmatpush1.xpose.msra.mxu0 0.0
    %1823 = vmatprep.subr.mxu0 0.0
    %1824 = vmatpush1.xpose.msra.mxu0 0.0
    %1825 = vmatprep.subr.mxu0 0.0
    %1826 = vmatpush1.xpose.msra.mxu0 0.0
    %1827 = vmatprep.subr.mxu0 0.0
    %1828 = vmatpush1.xpose.msra.mxu0 0.0
    %1829 = vmatprep.subr.mxu0 0.0
    %1830 = vmatpush1.xpose.msra.mxu0 0.0
    %1831 = vmatprep.subr.mxu0 0.0
    %1832 = vmatpush1.xpose.msra.mxu0 0.0
    %1833 = vmatprep.subr.mxu0 0.0
    %1834 = vmatpush1.xpose.msra.mxu0 0.0
    %1835 = vmatprep.subr.mxu0 0.0
    %1836 = vmatpush1.xpose.msra.mxu0 0.0
    %1837 = vmatprep.subr.mxu0 0.0
    %1838 = vmatpush1.xpose.msra.mxu0 0.0
    %1839 = vmatprep.subr.mxu0 0.0
    %1840 = vmatpush1.xpose.msra.mxu0 0.0
    %1841 = vmatprep.subr.mxu0 0.0
    %1842 = vmatpush1.xpose.msra.mxu0 0.0
    %1843 = vmatprep.subr.mxu0 0.0
    %1844 = vmatpush1.xpose.msra.mxu0 0.0
    %1845 = vmatprep.subr.mxu0 0.0
    %1846 = vmatpush1.xpose.msra.mxu0 0.0
    %1847 = vmatprep.subr.mxu0 0.0
    %1848 = vmatpush1.xpose.msra.mxu0 0.0
    %1849 = vmatprep.subr.mxu0 0.0
    %1850 = vmatpush1.xpose.msra.mxu0 0.0
    %1851 = vmatprep.subr.mxu0 0.0
    %1852 = vmatpush1.xpose.msra.mxu0 0.0
    %1853 = vmatprep.subr.mxu0 0.0
    %1854 = vmatpush1.xpose.msra.mxu0 0.0
    %1855 = vmatprep.subr.mxu0 0.0
    %1856 = vmatpush1.xpose.msra.mxu0 0.0
    %1857 = vmatprep.subr.mxu0 0.0
    %1858 = vmatpush1.xpose.msra.mxu0 0.0
    %1859 = vmatprep.subr.mxu0 0.0
    %1860 = vmatpush1.xpose.msra.mxu0 0.0
    %1861 = vmatprep.subr.mxu0 0.0
    %1862 = vmatpush1.xpose.msra.mxu0 0.0
    %1863 = vmatprep.subr.mxu0 0.0
    %1864 = vmatpush1.xpose.msra.mxu0 0.0
    %1865 = vmatprep.subr.mxu0 0.0
    %1866 = vmatpush1.xpose.msra.mxu0 0.0
    %1867 = vmatprep.mubr.f32.mxu0 0.0
    %1868 = vmatmul.mubr.f32.gmra.mrb[0].mxu0 %v1724
    %v1869 = vpop.f32.mrb[0].mxu0
    %v1870 = vadd.f32 0.0, %v1869
    %v1871 = vpop.f32.mrb[0].mxu0
    %1872 = vmatprep.mubr.f32.mxu0 0.0
    %1873 = vmatmul.mubr.f32.gmra.mrb[0].mxu0 %v1726
    %v1874 = vpop.f32.mrb[0].mxu0
    %v1875 = vadd.f32 0.0, %v1874
    %v1876 = vpop.f32.mrb[0].mxu0
    %1877 = vdwg.mxu0
    %v1878 = vmul.f32 %v1870, %v457
    %v1879 = vmul.f32 %v1875, %v457
    %v1880 = vmax.f32 %v1878, -5.0
    %v1881 = vmax.f32 %v1879, -5.0
    %v1882 = vmin.f32 %v1880, 5.0
    %v1883 = vmin.f32 %v1881, 5.0
    %v1884 = vmul.f32 %v1882, 1.442695
    %v1885 = vpow.pop %v1884
    %v1886 = vmul.f32 %v1883, 1.442695
    %v1887 = vpow.pop %v1886
    %v1888 = vmul.f32 %v1885, %v32
    %v1889 = vmul.f32 %v1887, %v33
    %v1890 = vsel %vm219, %v1888, 0.0
    %1891 = vadd.xlane.f32.xlu0 %v1890
    %v1892 = vpop.xlane.xlu0 %1891
    %v1893 = vsel %vm219, %v1889, 0.0
    %1894 = vadd.xlane.f32.xlu0 %v1893
    %v1895 = vpop.xlane.xlu0 %1894
    %v1896 = vrcp.pop %v1892
    %v1897 = vrcp.pop %v1895
    %v1899 = vsel %vm219, %v1888, 0
    %v1902 = vsel %vm219, %v1889, 0
    %1904 = vmatprep.subr.mxu0 0.0
    %1905 = vmatpush1.msra.mxu0 %v1712
    %1906 = vmatprep.subr.mxu0 0.0
    %1907 = vmatpush1.msra.mxu0 %v1717
    %1908 = vmatprep.subr.mxu0 0.0
    %1909 = vmatpush1.msra.mxu0 0.0
    %1910 = vmatprep.subr.mxu0 0.0
    %1911 = vmatpush1.msra.mxu0 0.0
    %1912 = vmatprep.subr.mxu0 0.0
    %1913 = vmatpush1.msra.mxu0 0.0
    %1914 = vmatprep.subr.mxu0 0.0
    %1915 = vmatpush1.msra.mxu0 0.0
    %1916 = vmatprep.subr.mxu0 0.0
    %1917 = vmatpush1.msra.mxu0 0.0
    %1918 = vmatprep.subr.mxu0 0.0
    %1919 = vmatpush1.msra.mxu0 0.0
    %1920 = vmatprep.subr.mxu0 0.0
    %1921 = vmatpush1.msra.mxu0 0.0
    %1922 = vmatprep.subr.mxu0 0.0
    %1923 = vmatpush1.msra.mxu0 0.0
    %1924 = vmatprep.subr.mxu0 0.0
    %1925 = vmatpush1.msra.mxu0 0.0
    %1926 = vmatprep.subr.mxu0 0.0
    %1927 = vmatpush1.msra.mxu0 0.0
    %1928 = vmatprep.subr.mxu0 0.0
    %1929 = vmatpush1.msra.mxu0 0.0
    %1930 = vmatprep.subr.mxu0 0.0
    %1931 = vmatpush1.msra.mxu0 0.0
    %1932 = vmatprep.subr.mxu0 0.0
    %1933 = vmatpush1.msra.mxu0 0.0
    %1934 = vmatprep.subr.mxu0 0.0
    %1935 = vmatpush1.msra.mxu0 0.0
    %1936 = vmatprep.subr.mxu0 0.0
    %1937 = vmatpush1.msra.mxu0 0.0
    %1938 = vmatprep.subr.mxu0 0.0
    %1939 = vmatpush1.msra.mxu0 0.0
    %1940 = vmatprep.subr.mxu0 0.0
    %1941 = vmatpush1.msra.mxu0 0.0
    %1942 = vmatprep.subr.mxu0 0.0
    %1943 = vmatpush1.msra.mxu0 0.0
    %1944 = vmatprep.subr.mxu0 0.0
    %1945 = vmatpush1.msra.mxu0 0.0
    %1946 = vmatprep.subr.mxu0 0.0
    %1947 = vmatpush1.msra.mxu0 0.0
    %1948 = vmatprep.subr.mxu0 0.0
    %1949 = vmatpush1.msra.mxu0 0.0
    %1950 = vmatprep.subr.mxu0 0.0
    %1951 = vmatpush1.msra.mxu0 0.0
    %1952 = vmatprep.subr.mxu0 0.0
    %1953 = vmatpush1.msra.mxu0 0.0
    %1954 = vmatprep.subr.mxu0 0.0
    %1955 = vmatpush1.msra.mxu0 0.0
    %1956 = vmatprep.subr.mxu0 0.0
    %1957 = vmatpush1.msra.mxu0 0.0
    %1958 = vmatprep.subr.mxu0 0.0
    %1959 = vmatpush1.msra.mxu0 0.0
    %1960 = vmatprep.subr.mxu0 0.0
    %1961 = vmatpush1.msra.mxu0 0.0
    %1962 = vmatprep.subr.mxu0 0.0
    %1963 = vmatpush1.msra.mxu0 0.0
    %1964 = vmatprep.subr.mxu0 0.0
    %1965 = vmatpush1.msra.mxu0 0.0
    %1966 = vmatprep.subr.mxu0 0.0
    %1967 = vmatpush1.msra.mxu0 0.0
    %1968 = vmatprep.mubr.f32.mxu0 0.0
    %1969 = vmatmul.mubr.f32.gmra.mrb[0].mxu0 %v1899
    %v1970 = vpop.f32.mrb[0].mxu0
    %v1971 = vadd.f32 0.0, %v1970
    %v1972 = vpop.f32.mrb[0].mxu0
    %1973 = vmatprep.mubr.f32.mxu0 0.0
    %1974 = vmatmul.mubr.f32.gmra.mrb[0].mxu0 %v1902
    %v1975 = vpop.f32.mrb[0].mxu0
    %v1976 = vadd.f32 0.0, %v1975
    %v1977 = vpop.f32.mrb[0].mxu0
    %1978 = vdwg.mxu0
    %1979 = vxpose.xlu0.b32.start [1/16] %v1885, 128
    %1980 = vxpose.xlu0.b32.cont [2/16] %v1887, 128
    %1981 = vxpose.xlu0.b32.cont [3/16] 0.0, 128
    %1982 = vxpose.xlu0.b32.cont [4/16] 0.0, 128
    %1983 = vxpose.xlu0.b32.cont [5/16] 0.0, 128
    %1984 = vxpose.xlu0.b32.cont [6/16] 0.0, 128
    %1985 = vxpose.xlu0.b32.cont [7/16] 0.0, 128
    %1986 = vxpose.xlu0.b32.cont [8/16] 0.0, 128
    %1987 = vxpose.xlu0.b32.cont [9/16] 0.0, 128
    %1988 = vxpose.xlu0.b32.cont [10/16] 0.0, 128
    %1989 = vxpose.xlu0.b32.cont [11/16] 0.0, 128
    %1990 = vxpose.xlu0.b32.cont [12/16] 0.0, 128
    %1991 = vxpose.xlu0.b32.cont [13/16] 0.0, 128
    %1992 = vxpose.xlu0.b32.cont [14/16] 0.0, 128
    %1993 = vxpose.xlu0.b32.cont [15/16] 0.0, 128
    %1994 = vxpose.xlu0.b32.end [16/16] 0.0, 128
    %v1995 = vpop.trf.xlu0
    %v1996 = vpop.trf.xlu0
    %v1997 = vpop.trf.xlu0
    %v1998 = vpop.trf.xlu0
    %v1999 = vpop.trf.xlu0
    %v2000 = vpop.trf.xlu0
    %v2001 = vpop.trf.xlu0
    %v2002 = vpop.trf.xlu0
    %v2003 = vpop.trf.xlu0
    %v2004 = vpop.trf.xlu0
    %v2005 = vpop.trf.xlu0
    %v2006 = vpop.trf.xlu0
    %v2007 = vpop.trf.xlu0
    %v2008 = vpop.trf.xlu0
    %v2009 = vpop.trf.xlu0
    %v2010 = vpop.trf.xlu0
    %v2011 = vmul.f32 %v1995, %v32
    %v2012 = vmul.f32 %v1996, %v33
    %v2013 = vmul.f32 %v1795, %v1896
    %v2014 = vmul.f32 %v1800, %v1897
    %v2016 = vsel %vm219, %v2011, 0
    %v2019 = vsel %vm219, %v2012, 0
    %2021 = vmatprep.subr.mxu0 0.0
    %2022 = vmatpush1.msra.mxu0 %v2013
    %2023 = vmatprep.subr.mxu0 0.0
    %2024 = vmatpush1.msra.mxu0 %v2014
    %2025 = vmatprep.subr.mxu0 0.0
    %2026 = vmatpush1.msra.mxu0 0.0
    %2027 = vmatprep.subr.mxu0 0.0
    %2028 = vmatpush1.msra.mxu0 0.0
    %2029 = vmatprep.subr.mxu0 0.0
    %2030 = vmatpush1.msra.mxu0 0.0
    %2031 = vmatprep.subr.mxu0 0.0
    %2032 = vmatpush1.msra.mxu0 0.0
    %2033 = vmatprep.subr.mxu0 0.0
    %2034 = vmatpush1.msra.mxu0 0.0
    %2035 = vmatprep.subr.mxu0 0.0
    %2036 = vmatpush1.msra.mxu0 0.0
    %2037 = vmatprep.subr.mxu0 0.0
    %2038 = vmatpush1.msra.mxu0 0.0
    %2039 = vmatprep.subr.mxu0 0.0
    %2040 = vmatpush1.msra.mxu0 0.0
    %2041 = vmatprep.subr.mxu0 0.0
    %2042 = vmatpush1.msra.mxu0 0.0
    %2043 = vmatprep.subr.mxu0 0.0
    %2044 = vmatpush1.msra.mxu0 0.0
    %2045 = vmatprep.subr.mxu0 0.0
    %2046 = vmatpush1.msra.mxu0 0.0
    %2047 = vmatprep.subr.mxu0 0.0
    %2048 = vmatpush1.msra.mxu0 0.0
    %2049 = vmatprep.subr.mxu0 0.0
    %2050 = vmatpush1.msra.mxu0 0.0
    %2051 = vmatprep.subr.mxu0 0.0
    %2052 = vmatpush1.msra.mxu0 0.0
    %2053 = vmatprep.subr.mxu0 0.0
    %2054 = vmatpush1.msra.mxu0 0.0
    %2055 = vmatprep.subr.mxu0 0.0
    %2056 = vmatpush1.msra.mxu0 0.0
    %2057 = vmatprep.subr.mxu0 0.0
    %2058 = vmatpush1.msra.mxu0 0.0
    %2059 = vmatprep.subr.mxu0 0.0
    %2060 = vmatpush1.msra.mxu0 0.0
    %2061 = vmatprep.subr.mxu0 0.0
    %2062 = vmatpush1.msra.mxu0 0.0
    %2063 = vmatprep.subr.mxu0 0.0
    %2064 = vmatpush1.msra.mxu0 0.0
    %2065 = vmatprep.subr.mxu0 0.0
    %2066 = vmatpush1.msra.mxu0 0.0
    %2067 = vmatprep.subr.mxu0 0.0
    %2068 = vmatpush1.msra.mxu0 0.0
    %2069 = vmatprep.subr.mxu0 0.0
    %2070 = vmatpush1.msra.mxu0 0.0
    %2071 = vmatprep.subr.mxu0 0.0
    %2072 = vmatpush1.msra.mxu0 0.0
    %2073 = vmatprep.subr.mxu0 0.0
    %2074 = vmatpush1.msra.mxu0 0.0
    %2075 = vmatprep.subr.mxu0 0.0
    %2076 = vmatpush1.msra.mxu0 0.0
    %2077 = vmatprep.subr.mxu0 0.0
    %2078 = vmatpush1.msra.mxu0 0.0
    %2079 = vmatprep.subr.mxu0 0.0
    %2080 = vmatpush1.msra.mxu0 0.0
    %2081 = vmatprep.subr.mxu0 0.0
    %2082 = vmatpush1.msra.mxu0 0.0
    %2083 = vmatprep.subr.mxu0 0.0
    %2084 = vmatpush1.msra.mxu0 0.0
    %2085 = vmatprep.mubr.f32.mxu0 0.0
    %2086 = vmatmul.mubr.f32.gmra.mrb[0].mxu0 %v2016
    %v2087 = vpop.f32.mrb[0].mxu0
    %v2088 = vadd.f32 0.0, %v2087
    %v2089 = vpop.f32.mrb[0].mxu0
    %2090 = vmatprep.mubr.f32.mxu0 0.0
    %2091 = vmatmul.mubr.f32.gmra.mrb[0].mxu0 %v2019
    %v2092 = vpop.f32.mrb[0].mxu0
    %v2093 = vadd.f32 0.0, %v2092
    %v2094 = vpop.f32.mrb[0].mxu0
    %2095 = vdwg.mxu0
    %v2096 = vmul.f32 %v1971, %v1896
    %v2097 = vmul.f32 %v1976, %v1897
    %v2098 = vadd.f32 %v1627, %v2096
    %v2099 = vadd.f32 %v1628, %v2097
    %v2100 = vadd.f32 %v2098, %v2088
    %v2101 = vadd.f32 %v2099, %v2093
    %v2102 = vlog2.pop %v1892
    %v2103 = vmul.f32 %v2102, 0.6931472
    %v2104 = vlog2.pop %v1895
    %v2105 = vmul.f32 %v2104, 0.6931472
    %v2106 = vmul.f32 %v686, %v2103
    %v2107 = vmul.f32 %v686, %v2105
    %v2108 = vadd.f32 %v1635, %v2106
    %v2109 = vadd.f32 %v1636, %v2107
    %2110 = vst.msk [vmem:[#allocation3] sm:$0xff] %vm42, %v2100
    %2111 = vst.msk [vmem:[#allocation3 + $0x8] sm:$0xff] %vm42, %v2101
    %vm2112 = vcmask 7168
    %2113 = vst.msk [vmem:[%s8] sm:$0xff] %vm2112, %v2108
    %2114 = vst.msk [vmem:[%s8 + $0x8] sm:$0xff] %vm2112, %v2109
    // Predicated region
    $region30: #{tpu_custom_call.1} parent=1 // pred_check
      _
    $region31: #{tpu_custom_call.1} parent=1 // pred_check_branch
      %2116 = sbr.rel (0) target = $region33
    $region32: #{tpu_custom_call.1} parent=1 // pred_region
      %s2118 = ssub.s32 256, 256
      %2119 = vsyncadd [#allocation4], %s2118
      %s2120 = sshll.u32 [#allocation3], 4
      %s2121 = int_to_ptr.vmem [resolvable:$true] %s2120
      %2126 = dma.vmem_to_hbm [thread:$0]  %s2121, 256, %s7, [#allocation4], 128, 128, 8
    $region33: #{tpu_custom_call.1} parent=1 // pred_fallthru
      _
    // Predicated region
    $region34: #{tpu_custom_call.1} parent=1 // pred_check
      _
    $region35: #{tpu_custom_call.1} parent=1 // pred_check_branch
      %2128 = sbr.rel (0) target = $region37
    $region36: #{tpu_custom_call.1} parent=1 // pred_region
      _
    $region37: #{tpu_custom_call.1} parent=1 // pred_fallthru
      _
    // Predicated region
    $region38: #{tpu_custom_call.1} parent=1 // pred_check
      _
    $region39: #{tpu_custom_call.1} parent=1 // pred_check_branch
      %2130 = sbr.rel (0) target = $region41
    $region40: #{tpu_custom_call.1} parent=1 // pred_region
      %2131 = dma.done [#allocation4], 256
    $region41: #{tpu_custom_call.1} parent=1 // pred_fallthru
      _
    // Predicated region
    $region42: #{tpu_custom_call.1} parent=1 // pred_check
      _
    $region43: #{tpu_custom_call.1} parent=1 // pred_check_branch
      %2133 = sbr.rel (0) target = $region45
    $region44: #{tpu_custom_call.1} parent=1 // pred_region
      _
    $region45: #{tpu_custom_call.1} parent=1 // pred_fallthru
      _
    %2134 = vsyncpa [#allocation4], 1

</llo_original>
